<compile_context>
chip_gen: v6e
topology: v6e:2x2x1
jax: 0.10.0
libtpu: 0.0.40
codegen_flags: <defaults>
</compile_context>

<pallas_src>
import functools

import jax
import jax.numpy as jnp
from jax.experimental import pallas as pl
from jax.experimental.pallas import tpu as pltpu


# -----------------------------------------------------------------------------
# Fused self-attention kernel (one grid step = one batch element x one q-tile)
# -----------------------------------------------------------------------------
def _self_attn_kernel(xf_ref, mt_ref, wkbq_ref, wv_ref, bv_ref, gamma_ref,
                      out_ref, attn_ref, *, tq):
    """xf_ref  : (1, C, N) f32  full image, channel-major (lane dim = N)
       mt_ref  : (C, C)    f32  Wk^T @ Wq   (fused q/k projection)
       wkbq_ref: (C, 1)    f32  Wk^T @ bq   (key bias, folded into t)
       wv_ref  : (C, C)    f32  Wv
       bv_ref  : (C, 1)    f32  bv
       gamma   : (1,)      f32  scalar (SMEM)
       out_ref : (1, C, TQ)     ;  attn_ref: (1, TQ, N)"""
    N = xf_ref.shape[2]

    x_full = xf_ref[0]                                   # (C, N) f32
    x_bf = x_full.astype(jnp.bfloat16)                   # operands of the big matmuls

    if tq == N:                                          # single query tile
        x_q = x_full
    else:                                                # slice tile out of resident block
        qi = pl.program_id(1)
        align = 128 if tq % 128 == 0 else tq
        start = pl.multiple_of(qi * tq, align)
        x_q = xf_ref[0, :, pl.ds(start, tq)]             # (C, TQ) f32

    # Fused query/key projection: t = Wk^T Wq x_q + Wk^T bq  -> (C, TQ).
    # energy[i, j] = t_i . x_j  equals the torch energy up to a per-row constant,
    # which softmax(dim=-1) cancels exactly.
    t = jnp.dot(mt_ref[...], x_q, preferred_element_type=jnp.float32) + wkbq_ref[...]

    energy = jax.lax.dot_general(
        t.astype(jnp.bfloat16), x_bf,
        (((0,), (0,)), ((), ())),
        preferred_element_type=jnp.float32)              # (TQ, N), contraction over C

    # Numerically stable row softmax (f32); divide -> EUP approximate reciprocal.
    m = jnp.max(energy, axis=-1, keepdims=True)
    p = jnp.exp(energy - m)
    inv = pl.reciprocal(jnp.sum(p, axis=-1, keepdims=True), approx=True)
    attn = p * inv
    attn_ref[0] = attn.astype(attn_ref.dtype)

    # Fused value projection: out = Wv (X @ attn^T) + bv  (attention rows sum to 1).
    ctx = jax.lax.dot_general(
        x_bf, attn.astype(jnp.bfloat16),
        (((1,), (1,)), ((), ())),
        preferred_element_type=jnp.float32)              # (C, TQ)
    out = jnp.dot(wv_ref[...], ctx, preferred_element_type=jnp.float32) + bv_ref[...]

    # gamma * out + residual, channel-major (lane dim = TQ, dense stores).
    out_ref[0] = (gamma_ref[0] * out + x_q).astype(out_ref.dtype)


# -----------------------------------------------------------------------------
# VMEM budgeting / tile selection
# -----------------------------------------------------------------------------
def _vmem_capacity_bytes():
    try:
        return int(pltpu.get_tpu_info().vmem_capacity_bytes)
    except Exception:
        return 64 * 1024 * 1024       # conservative (v7x per-core); safe everywhere


def _est_vmem_bytes(C, N, tq):
    fp = 2 * C * N * 4                # x block, f32, double-buffered
    fp += 2 * tq * N * 4              # attn output block, double-buffered
    fp += 2 * C * tq * 4              # out block, double-buffered
    fp += C * N * 2                   # bf16 copy of x
    fp += 4 * tq * N * 4              # energy / exp / attn f32 temporaries
    fp += 2 * C * C * 4 + 4 * C * tq * 4 + 8 * C
    return fp


def _pick_tq(C, N, budget):
    # Largest lane-aligned (multiple-of-128) divisor of N that fits the budget;
    # N itself is also a candidate (it is always a valid, store-dense block).
    cands = [d for d in range(N, 0, -1) if N % d == 0 and (d % 128 == 0 or d == N)]
    for tq in cands:
        if _est_vmem_bytes(C, N, tq) <= budget:
            return tq
    return cands[-1]                  # smallest candidate; vmem_limit covers the rest


# -----------------------------------------------------------------------------
# Wrapper
# -----------------------------------------------------------------------------
@functools.partial(jax.jit, static_argnames=("attn_dtype",))
def self_attn(x, wq, bq, wk, bk, wv, bv, gamma, *, attn_dtype=jnp.float32):
    """x: (B, C, H, W) f32. wq/wk: (C//8, C, 1, 1), wv: (C, C, 1, 1), biases 1-D,
    gamma: (1,). Returns (out (B, C, H, W), attention (B, N, N)), N = H*W.
    attn_dtype=jnp.bfloat16 halves the N^2 attention writeback (v5e option)."""
    B, C, H, W = x.shape
    N = H * W
    Cq = wq.shape[0]
    del bk  # bk only shifts each energy row by a constant -> softmax(dim=-1) cancels it.

    hp = jax.lax.Precision.HIGHEST
    # Free reshapes only — no host-side transposes of the activation tensor.
    x_cn = x.reshape(B, C, N)                         # channel-major, N in the lane dim
    wq2 = wq.reshape(Cq, C)
    wk2 = wk.reshape(Cq, C)
    mt = jnp.dot(wk2.T, wq2, precision=hp)            # (C, C) = Wk^T Wq
    wkbq = jnp.dot(wk2.T, bq, precision=hp).reshape(C, 1)
    wv2 = wv.reshape(C, C)
    bv_col = bv.reshape(C, 1)
    gamma1 = gamma.reshape(1)

    cap = _vmem_capacity_bytes()
    budget = max(int(0.5 * cap), 16 * 1024 * 1024)
    vmem_limit = max(int(0.85 * cap), 32 * 1024 * 1024)
    TQ = _pick_tq(C, N, budget)
    num_q = N // TQ

    kernel = functools.partial(_self_attn_kernel, tq=TQ)

    flops = 4 * B * C * N * (N + C)                   # two N^2 matmuls + two CxC matmuls
    bytes_accessed = 8 * B * C * N + 4 * B * N * N + 4 * (2 * C * C + 2 * C + 1)

    out_cn, attn = pl.pallas_call(
        kernel,
        out_shape=(
            jax.ShapeDtypeStruct((B, C, N), x.dtype),
            jax.ShapeDtypeStruct((B, N, N), attn_dtype),
        ),
        grid_spec=pltpu.PrefetchScalarGridSpec(
            num_scalar_prefetch=0,
            grid=(B, num_q),
            in_specs=[
                # full per-batch image (single x input; query tile sliced in-kernel)
                pl.BlockSpec((1, C, N), lambda b, qi: (b, 0, 0)),
                pl.BlockSpec((C, C), lambda b, qi: (0, 0)),      # Wk^T Wq
                pl.BlockSpec((C, 1), lambda b, qi: (0, 0)),      # Wk^T bq
                pl.BlockSpec((C, C), lambda b, qi: (0, 0)),      # Wv
                pl.BlockSpec((C, 1), lambda b, qi: (0, 0)),      # bv
                pl.BlockSpec(memory_space=pltpu.MemorySpace.SMEM),  # gamma scalar
            ],
            out_specs=[
                pl.BlockSpec((1, C, TQ), lambda b, qi: (b, 0, qi)),
                pl.BlockSpec((1, TQ, N), lambda b, qi: (b, qi, 0)),
            ],
        ),
        compiler_params=pltpu.CompilerParams(
            # No cross-tile state -> both axes parallel (megacore even for B == 1).
            dimension_semantics=("parallel", "parallel"),
            vmem_limit_bytes=vmem_limit,
        ),
        cost_estimate=pl.CostEstimate(
            flops=flops, transcendentals=B * N * N, bytes_accessed=bytes_accessed),
    )(x_cn, mt, wkbq, wv2, bv_col, gamma1)

    return out_cn.reshape(B, C, H, W), attn


# -----------------------------------------------------------------------------
# Pure-JAX reference (full, unfused formula) for a sanity check
# -----------------------------------------------------------------------------
def _reference(x, wq, bq, wk, bk, wv, bv, gamma):
    B, C, H, W = x.shape
    N = H * W
    Cq = wq.shape[0]
    hp = jax.lax.Precision.HIGHEST
    xf = x.reshape(B, C, N)
    q = jnp.einsum("oc,bcn->bon", wq.reshape(Cq, C), xf, precision=hp) + bq[None, :, None]
    k = jnp.einsum("oc,bcn->bon", wk.reshape(Cq, C), xf, precision=hp) + bk[None, :, None]
    v = jnp.einsum("oc,bcn->bon", wv.reshape(C, C), xf, precision=hp) + bv[None, :, None]
    energy = jnp.einsum("bci,bcj->bij", q, k, precision=hp)
    attn = jax.nn.softmax(energy, axis=-1)
    out = jnp.einsum("bcj,bij->bci", v, attn, precision=hp)
    out = gamma.reshape(()) * out + xf
    return out.reshape(B, C, H, W), attn


if __name__ == "__main__":
    key = jax.random.PRNGKey(0)
    ks = jax.random.split(key, 8)

    B, C, H, W = 2, 32, 16, 16          # in_dim = 32  ->  q/k channels = 4
    Cq = C // 8

    x = jax.random.normal(ks[0], (B, C, H, W), dtype=jnp.float32)
    # Conv2d 1x1 weights (out, in, 1, 1) + biases, PyTorch layout.
    wq = jax.random.normal(ks[1], (Cq, C, 1, 1), dtype=jnp.float32) * 0.1
    bq = jax.random.normal(ks[2], (Cq,), dtype=jnp.float32) * 0.1
    wk = jax.random.normal(ks[3], (Cq, C, 1, 1), dtype=jnp.float32) * 0.1
    bk = jax.random.normal(ks[4], (Cq,), dtype=jnp.float32) * 0.1
    wv = jax.random.normal(ks[5], (C, C, 1, 1), dtype=jnp.float32) * 0.1
    bv = jax.random.normal(ks[6], (C,), dtype=jnp.float32) * 0.1
    # gamma is initialized to 0 in the module; use a non-trivial value so the
    # residual path is actually exercised.
    gamma = 0.5 + 0.1 * jax.random.normal(ks[7], (1,), dtype=jnp.float32)

    out, attn = self_attn(x, wq, bq, wk, bk, wv, bv, gamma)
    out = jax.block_until_ready(out)
    attn = jax.block_until_ready(attn)

    ref_out, ref_attn = _reference(x, wq, bq, wk, bk, wv, bv, gamma)

    assert out.shape == (B, C, H, W), out.shape
    assert attn.shape == (B, H * W, H * W), attn.shape
    assert jnp.allclose(attn, ref_attn, atol=2e-3, rtol=2e-3), \
        float(jnp.max(jnp.abs(attn - ref_attn)))
    assert jnp.allclose(out, ref_out, atol=2e-3, rtol=2e-3), \
        float(jnp.max(jnp.abs(out - ref_out)))

    print("KERNEL_OK")
</pallas_src>

<mosaic_0001>
module attributes {stable_mosaic.version = 11 : i64} {
  func.func @_self_attn_kernel(%arg0: i32, %arg1: i32, %arg2: memref<1x32x256xf32, #tpu.memory_space<vmem>>, %arg3: memref<32x32xf32, #tpu.memory_space<vmem>>, %arg4: memref<32x1xf32, #tpu.memory_space<vmem>>, %arg5: memref<32x32xf32, #tpu.memory_space<vmem>>, %arg6: memref<32x1xf32, #tpu.memory_space<vmem>>, %arg7: memref<1xf32, #tpu.memory_space<smem>>, %arg8: memref<1x32x256xf32, #tpu.memory_space<vmem>>, %arg9: memref<1x256x256xf32, #tpu.memory_space<vmem>>) attributes {dimension_semantics = [#tpu.dimension_semantics<parallel>, #tpu.dimension_semantics<parallel>], iteration_bounds = array<i64: 2, 1>, scalar_prefetch = 0 : i64, scratch_operands = 0 : i64, tpu.core_type = #tpu.core_type<tc>, window_params = [{transform_indices = @transform_0, window_bounds = array<i64: 1, 32, 256>}, {pipeline_mode = #tpu.pipeline_mode<synchronous>, transform_indices = @transform_1, window_bounds = array<i64: 32, 32>}, {pipeline_mode = #tpu.pipeline_mode<synchronous>, transform_indices = @transform_2, window_bounds = array<i64: 32, 1>}, {pipeline_mode = #tpu.pipeline_mode<synchronous>, transform_indices = @transform_3, window_bounds = array<i64: 32, 32>}, {pipeline_mode = #tpu.pipeline_mode<synchronous>, transform_indices = @transform_4, window_bounds = array<i64: 32, 1>}, {transform_indices = @transform_5, window_bounds = array<i64: 1>}, {transform_indices = @transform_6, window_bounds = array<i64: 1, 32, 256>}, {transform_indices = @transform_7, window_bounds = array<i64: 1, 256, 256>}]} {
    %c0 = arith.constant 0 : index
    %c0_0 = arith.constant 0 : index
    %c0_1 = arith.constant 0 : index
    %0 = vector.load %arg2[%c0, %c0_0, %c0_1] : memref<1x32x256xf32, #tpu.memory_space<vmem>>, vector<1x32x256xf32>
    %1 = vector.shape_cast %0 : vector<1x32x256xf32> to vector<32x256xf32>
    %2 = arith.truncf %1 : vector<32x256xf32> to vector<32x256xbf16>
    %c0_2 = arith.constant 0 : index
    %c0_3 = arith.constant 0 : index
    %3 = vector.load %arg3[%c0_2, %c0_3] : memref<32x32xf32, #tpu.memory_space<vmem>>, vector<32x32xf32>
    %cst = arith.constant dense<0.000000e+00> : vector<32x256xf32>
    %4 = tpu.matmul %3, %1, %cst {dimension_numbers = #tpu.dot_dimension_numbers<[1], [0], [0], [1], [0, 0, 1, 1], [], []>} : vector<32x32xf32>, vector<32x256xf32>, vector<32x256xf32> -> vector<32x256xf32>
    %c0_4 = arith.constant 0 : index
    %c0_5 = arith.constant 0 : index
    %5 = vector.load %arg4[%c0_4, %c0_5] : memref<32x1xf32, #tpu.memory_space<vmem>>, vector<32x1xf32>
    %6 = vector.broadcast %5 : vector<32x1xf32> to vector<32x256xf32>
    %7 = arith.addf %4, %6 : vector<32x256xf32>
    %8 = arith.truncf %7 : vector<32x256xf32> to vector<32x256xbf16>
    %cst_6 = arith.constant dense<0.000000e+00> : vector<256x256xf32>
    %9 = tpu.matmul %8, %2, %cst_6 {dimension_numbers = #tpu.dot_dimension_numbers<[0], [0], [1], [1], [0, 1, 1, 1], [], []>} : vector<32x256xbf16>, vector<32x256xbf16>, vector<256x256xf32> -> vector<256x256xf32>
    %cst_7 = arith.constant dense<0xFF800000> : vector<256xf32>
    %10 = vector.multi_reduction <maximumf>, %9, %cst_7 [1] : vector<256x256xf32> to vector<256xf32>
    %11 = vector.shape_cast %10 : vector<256xf32> to vector<256x1xf32>
    %12 = vector.broadcast %11 : vector<256x1xf32> to vector<256x256xf32>
    %13 = arith.subf %9, %12 : vector<256x256xf32>
    %14 = math.exp %13 : vector<256x256xf32>
    %cst_8 = arith.constant dense<0.000000e+00> : vector<256xf32>
    %15 = vector.multi_reduction <add>, %14, %cst_8 [1] : vector<256x256xf32> to vector<256xf32>
    %16 = vector.shape_cast %15 : vector<256xf32> to vector<256x1xf32>
    %17 = tpu.reciprocal %16 {approx = true} : vector<256x1xf32> -> vector<256x1xf32>
    %18 = vector.broadcast %17 : vector<256x1xf32> to vector<256x256xf32>
    %19 = arith.mulf %14, %18 : vector<256x256xf32>
    %c0_9 = arith.constant 0 : index
    %c0_10 = arith.constant 0 : index
    %c0_11 = arith.constant 0 : index
    %20 = vector.load %arg9[%c0_9, %c0_10, %c0_11] : memref<1x256x256xf32, #tpu.memory_space<vmem>>, vector<1x256x256xf32>
    %21 = vector.shape_cast %20 : vector<1x256x256xf32> to vector<256x256xf32>
    %22 = vector.shape_cast %19 : vector<256x256xf32> to vector<1x256x256xf32>
    tpu.vector_store %arg9[%c0_9, %c0_10, %c0_11], %22 {strides = array<i32>} : memref<1x256x256xf32, #tpu.memory_space<vmem>>, vector<1x256x256xf32>,
    %23 = arith.truncf %19 : vector<256x256xf32> to vector<256x256xbf16>
    %cst_12 = arith.constant dense<0.000000e+00> : vector<32x256xf32>
    %24 = tpu.matmul %2, %23, %cst_12 {dimension_numbers = #tpu.dot_dimension_numbers<[1], [1], [0], [0], [0, 0, 1, 0], [], []>} : vector<32x256xbf16>, vector<256x256xbf16>, vector<32x256xf32> -> vector<32x256xf32>
    %c0_13 = arith.constant 0 : index
    %c0_14 = arith.constant 0 : index
    %25 = vector.load %arg5[%c0_13, %c0_14] : memref<32x32xf32, #tpu.memory_space<vmem>>, vector<32x32xf32>
    %cst_15 = arith.constant dense<0.000000e+00> : vector<32x256xf32>
    %26 = tpu.matmul %25, %24, %cst_15 {dimension_numbers = #tpu.dot_dimension_numbers<[1], [0], [0], [1], [0, 0, 1, 1], [], []>} : vector<32x32xf32>, vector<32x256xf32>, vector<32x256xf32> -> vector<32x256xf32>
    %c0_16 = arith.constant 0 : index
    %c0_17 = arith.constant 0 : index
    %27 = vector.load %arg6[%c0_16, %c0_17] : memref<32x1xf32, #tpu.memory_space<vmem>>, vector<32x1xf32>
    %28 = vector.broadcast %27 : vector<32x1xf32> to vector<32x256xf32>
    %29 = arith.addf %26, %28 : vector<32x256xf32>
    %c0_18 = arith.constant 0 : index
    %30 = memref.load %arg7[%c0_18] : memref<1xf32, #tpu.memory_space<smem>>
    %31 = vector.broadcast %30 : f32 to vector<32x256xf32>
    %32 = arith.mulf %31, %29 : vector<32x256xf32>
    %33 = arith.addf %32, %1 : vector<32x256xf32>
    %c0_19 = arith.constant 0 : index
    %c0_20 = arith.constant 0 : index
    %c0_21 = arith.constant 0 : index
    %34 = vector.load %arg8[%c0_19, %c0_20, %c0_21] : memref<1x32x256xf32, #tpu.memory_space<vmem>>, vector<1x32x256xf32>
    %35 = vector.shape_cast %34 : vector<1x32x256xf32> to vector<32x256xf32>
    %36 = vector.shape_cast %33 : vector<32x256xf32> to vector<1x32x256xf32>
    tpu.vector_store %arg8[%c0_19, %c0_20, %c0_21], %36 {strides = array<i32>} : memref<1x32x256xf32, #tpu.memory_space<vmem>>, vector<1x32x256xf32>,
    return
  }
  func.func @transform_0(%arg0: i32, %arg1: i32) -> (i32, i32, i32) {
    %c0_i32 = arith.constant 0 : i32
    %c0_i32_0 = arith.constant 0 : i32
    %c0_i32_1 = arith.constant 0 : i32
    return %arg0, %c0_i32, %c0_i32_0 : i32, i32, i32
  }
  func.func @transform_1(%arg0: i32, %arg1: i32) -> (i32, i32) {
    %c0_i32 = arith.constant 0 : i32
    %c0_i32_0 = arith.constant 0 : i32
    %c0_i32_1 = arith.constant 0 : i32
    return %c0_i32, %c0_i32_0 : i32, i32
  }
  func.func @transform_2(%arg0: i32, %arg1: i32) -> (i32, i32) {
    %c0_i32 = arith.constant 0 : i32
    %c0_i32_0 = arith.constant 0 : i32
    %c0_i32_1 = arith.constant 0 : i32
    return %c0_i32, %c0_i32_0 : i32, i32
  }
  func.func @transform_3(%arg0: i32, %arg1: i32) -> (i32, i32) {
    %c0_i32 = arith.constant 0 : i32
    %c0_i32_0 = arith.constant 0 : i32
    %c0_i32_1 = arith.constant 0 : i32
    return %c0_i32, %c0_i32_0 : i32, i32
  }
  func.func @transform_4(%arg0: i32, %arg1: i32) -> (i32, i32) {
    %c0_i32 = arith.constant 0 : i32
    %c0_i32_0 = arith.constant 0 : i32
    %c0_i32_1 = arith.constant 0 : i32
    return %c0_i32, %c0_i32_0 : i32, i32
  }
  func.func @transform_5(%arg0: i32, %arg1: i32) -> i32 {
    %c0_i32 = arith.constant 0 : i32
    %c0_i32_0 = arith.constant 0 : i32
    return %c0_i32 : i32
  }
  func.func @transform_6(%arg0: i32, %arg1: i32) -> (i32, i32, i32) {
    %c0_i32 = arith.constant 0 : i32
    %c0_i32_0 = arith.constant 0 : i32
    return %arg0, %c0_i32, %arg1 : i32, i32, i32
  }
  func.func @transform_7(%arg0: i32, %arg1: i32) -> (i32, i32, i32) {
    %c0_i32 = arith.constant 0 : i32
    %c0_i32_0 = arith.constant 0 : i32
    return %arg0, %arg1, %c0_i32 : i32, i32, i32
  }
}

</mosaic_0001>

<llo_original>
// kernel: self_attn.1
$region0: #{self_attn.1}
  #allocation0 [shape = 'u32[]', space=smem, size = 0x4, offset = 0x4, fixed_abs, tag = 'smem constant byte address 0x4 - core index']
  #allocation1 [shape = 'u32[144,128]{1,0:T(1,128)}', space=vmem, size = 0x12000, scoped, tag = 'internal scratch']
  #allocation2 [shape = 'f32[1]{0:T(128)S(6)}', space=smem, size = 0x200, scoped, tag = 'scoped memory for self_attn.1']
  %s0 = inlined_call_operand.vmem [shape: f32[2,32,256], index: 0, kind: input, shape index: {}]
  %s1 = inlined_call_operand.vmem [shape: f32[32,32], index: 1, kind: input, shape index: {}]
  %s2 = inlined_call_operand.vmem [shape: f32[32,1], index: 2, kind: input, shape index: {}]
  %s3 = inlined_call_operand.vmem [shape: f32[32,32], index: 3, kind: input, shape index: {}]
  %s4 = inlined_call_operand.vmem [shape: f32[32,1], index: 4, kind: input, shape index: {}]
  %s5 = inlined_call_operand.<no memory space> [shape: f32[1], index: 5, kind: input, shape index: {}]
  %s6 = inlined_call_operand.vmem [shape: f32[2,32,256], index: 6, kind: output, shape index: {0}]
  %s7 = inlined_call_operand.hbm [shape: f32[2,256,256], index: 7, kind: output, shape index: {1}]
  %8 = xla_tuple %s6, %s7
  %s9 = sld [smem:[#allocation0]]
  $region65: #{self_attn.1} parent=0
    _
  %s11 = ssub.s32 1, %s9
  %s12 = scalar_select 0, %s11, %s9
  %13 = sst [smem:[#allocation2]] %s5
  $region1: #{self_attn.1} parent=0
    #allocation3 [shape = 'u8[524288]{0}', space=vmem, size = 0x80000, scoped, tag = 'output window, operand 1']
    #allocation4 [shape = 's32[2]{0}', space=sflag, size = 0x8, scoped, tag = 'scoped memory for self_attn.1']
    %14 = vsyncpa [#allocation4], 0
    %s15 = scalar_lea.sflag [#allocation4], 1
    %16 = vsyncpa %s15, 0
    loop: start=0, step=1, limit=4
    $region2: #{self_attn.1} parent=1 // loop_pre_header
      _
    $region3: #{self_attn.1} parent=1 // loop_header
      %s18 = sphi 0, %s22
      %p19 = scmp.ge.s32.totalorder %s18, 4
      %s25 = sphi 0, %s37
      %s26 = sphi 0, %s33
      %s27 = sphi 0, %s25
      %s28 = sphi 0, %s26
      %s29 = sphi 0, %s27
      %s30 = sphi 0, %s28
      %s40 = sphi 0, %s42
      %s43 = sphi 0, %s40
      %s44 = sphi 0, %s43
      %s60 = sphi 0, %s44
      %s64 = sphi 0, %s64
      %s66 = sphi 0, %s64
      %s67 = sphi 0, %s66
      %s81 = sphi 0, %s67
      %s85 = sphi 0, %s85
      %s87 = sphi 0, %s85
      %s88 = sphi 0, %s87
      %s102 = sphi 0, %s88
      %s106 = sphi 0, %s106
      %s108 = sphi 0, %s106
      %s109 = sphi 0, %s108
      %s123 = sphi 0, %s109
      %s127 = sphi 0, %s127
      %s129 = sphi 0, %s127
      %s130 = sphi 0, %s129
      %s144 = sphi 0, %s130
      %s148 = sphi 0, %s148
      %s150 = sphi 0, %s148
      %s151 = sphi 0, %s150
      %s165 = sphi 0, %s151
      %s173 = sphi 0, %s175
      %s176 = sphi 0, %s173
      %s177 = sphi 0, %s176
      %s193 = sphi 0, %s177
      %s201 = sphi 0, %s203
      %s204 = sphi 0, %s201
      %s205 = sphi 0, %s204
      %s221 = sphi 0, %s205
    $region4: #{self_attn.1} parent=1 // loop_header_branch
      %21 = sbr.rel (%p19) target = $region8
    $region5: #{self_attn.1} parent=1 // loop_body
      %s23 = ssub.s32 %s18, 1
      %s24 = ssub.s32 %s18, 2
      %s31 = sadd.s32 1, %s26
      %p32 = scmp.ge.s32.totalorder %s31, 1
      %s33 = scalar_select %p32, 0, %s31
      %s34 = sadd.s32 1, %s25
      %s35 = scalar_select %p32, %s34, %s25
      %p36 = scmp.ge.s32.totalorder %s35, 2
      %s37 = scalar_select %p36, 0, %s35
      %s38 = ssub.s32 %s25, %s37
      %p39 = scmp.eq.s32.totalorder %s38, 0
      %s41 = sadd.s32 %s40, 1
      %s42 = scalar_select %p39, %s40, %s41
      %p45 = pneg %p39
      %p46 = scmp.eq.s32.totalorder %s18, 1
      %p47 = por %p45, %p46
      %p48 = scmp.ne.s32.totalorder %s40, %s43
      %p49 = scmp.eq.s32.totalorder %s18, 0
      %p50 = por %p48, %p49
      %p51 = scmp.ne.s32.totalorder %s40, %s43
      %p52 = scmp.eq.s32.totalorder %s23, 1
      %p53 = por %p51, %p52
      %p54 = scmp.ne.s32.totalorder %s43, %s44
      %p55 = scmp.eq.s32.totalorder %s23, 0
      %p56 = por %p54, %p55
      %p57 = scmp.ne.s32.totalorder %s43, %s44
      %p58 = scmp.eq.s32.totalorder %s24, 1
      %p59 = por %p57, %p58
      %p61 = scmp.ne.s32.totalorder %s44, %s60
      %p62 = scmp.eq.s32.totalorder %s24, 0
      %p63 = por %p61, %p62
      %s65 = sadd.s32 %s64, 1
      %p68 = scmp.eq.s32.totalorder %s18, 1
      %p69 = scmp.ne.s32.totalorder %s64, %s66
      %p70 = scmp.eq.s32.totalorder %s18, 0
      %p71 = por %p69, %p70
      %p72 = scmp.ne.s32.totalorder %s64, %s66
      %p73 = scmp.eq.s32.totalorder %s23, 1
      %p74 = por %p72, %p73
      %p75 = scmp.ne.s32.totalorder %s66, %s67
      %p76 = scmp.eq.s32.totalorder %s23, 0
      %p77 = por %p75, %p76
      %p78 = scmp.ne.s32.totalorder %s66, %s67
      %p79 = scmp.eq.s32.totalorder %s24, 1
      %p80 = por %p78, %p79
      %p82 = scmp.ne.s32.totalorder %s67, %s81
      %p83 = scmp.eq.s32.totalorder %s24, 0
      %p84 = por %p82, %p83
      %s86 = sadd.s32 %s85, 1
      %p89 = scmp.eq.s32.totalorder %s18, 1
      %p90 = scmp.ne.s32.totalorder %s85, %s87
      %p91 = scmp.eq.s32.totalorder %s18, 0
      %p92 = por %p90, %p91
      %p93 = scmp.ne.s32.totalorder %s85, %s87
      %p94 = scmp.eq.s32.totalorder %s23, 1
      %p95 = por %p93, %p94
      %p96 = scmp.ne.s32.totalorder %s87, %s88
      %p97 = scmp.eq.s32.totalorder %s23, 0
      %p98 = por %p96, %p97
      %p99 = scmp.ne.s32.totalorder %s87, %s88
      %p100 = scmp.eq.s32.totalorder %s24, 1
      %p101 = por %p99, %p100
      %p103 = scmp.ne.s32.totalorder %s88, %s102
      %p104 = scmp.eq.s32.totalorder %s24, 0
      %p105 = por %p103, %p104
      %s107 = sadd.s32 %s106, 1
      %p110 = scmp.eq.s32.totalorder %s18, 1
      %p111 = scmp.ne.s32.totalorder %s106, %s108
      %p112 = scmp.eq.s32.totalorder %s18, 0
      %p113 = por %p111, %p112
      %p114 = scmp.ne.s32.totalorder %s106, %s108
      %p115 = scmp.eq.s32.totalorder %s23, 1
      %p116 = por %p114, %p115
      %p117 = scmp.ne.s32.totalorder %s108, %s109
      %p118 = scmp.eq.s32.totalorder %s23, 0
      %p119 = por %p117, %p118
      %p120 = scmp.ne.s32.totalorder %s108, %s109
      %p121 = scmp.eq.s32.totalorder %s24, 1
      %p122 = por %p120, %p121
      %p124 = scmp.ne.s32.totalorder %s109, %s123
      %p125 = scmp.eq.s32.totalorder %s24, 0
      %p126 = por %p124, %p125
      %s128 = sadd.s32 %s127, 1
      %p131 = scmp.eq.s32.totalorder %s18, 1
      %p132 = scmp.ne.s32.totalorder %s127, %s129
      %p133 = scmp.eq.s32.totalorder %s18, 0
      %p134 = por %p132, %p133
      %p135 = scmp.ne.s32.totalorder %s127, %s129
      %p136 = scmp.eq.s32.totalorder %s23, 1
      %p137 = por %p135, %p136
      %p138 = scmp.ne.s32.totalorder %s129, %s130
      %p139 = scmp.eq.s32.totalorder %s23, 0
      %p140 = por %p138, %p139
      %p141 = scmp.ne.s32.totalorder %s129, %s130
      %p142 = scmp.eq.s32.totalorder %s24, 1
      %p143 = por %p141, %p142
      %p145 = scmp.ne.s32.totalorder %s130, %s144
      %p146 = scmp.eq.s32.totalorder %s24, 0
      %p147 = por %p145, %p146
      %s149 = sadd.s32 %s148, 1
      %p152 = scmp.eq.s32.totalorder %s18, 1
      %p153 = scmp.ne.s32.totalorder %s148, %s150
      %p154 = scmp.eq.s32.totalorder %s18, 0
      %p155 = por %p153, %p154
      %p156 = scmp.ne.s32.totalorder %s148, %s150
      %p157 = scmp.eq.s32.totalorder %s23, 1
      %p158 = por %p156, %p157
      %p159 = scmp.ne.s32.totalorder %s150, %s151
      %p160 = scmp.eq.s32.totalorder %s23, 0
      %p161 = por %p159, %p160
      %p162 = scmp.ne.s32.totalorder %s150, %s151
      %p163 = scmp.eq.s32.totalorder %s24, 1
      %p164 = por %p162, %p163
      %p166 = scmp.ne.s32.totalorder %s151, %s165
      %p167 = scmp.eq.s32.totalorder %s24, 0
      %p168 = por %p166, %p167
      %s169 = ssub.s32 %s25, %s37
      %s170 = ssub.s32 %s26, %s33
      %s171 = sor.u32 %s169, %s170
      %p172 = scmp.eq.s32.totalorder %s171, 0
      %s174 = sadd.s32 %s173, 1
      %s175 = scalar_select %p172, %s173, %s174
      %p178 = pneg %p172
      %p179 = scmp.eq.s32.totalorder %s18, 1
      %p180 = por %p178, %p179
      %p181 = scmp.ne.s32.totalorder %s173, %s176
      %p182 = scmp.eq.s32.totalorder %s18, 0
      %p183 = por %p181, %p182
      %p184 = scmp.ne.s32.totalorder %s173, %s176
      %p185 = scmp.eq.s32.totalorder %s23, 1
      %p186 = por %p184, %p185
      %p187 = scmp.ne.s32.totalorder %s176, %s177
      %p188 = scmp.eq.s32.totalorder %s23, 0
      %p189 = por %p187, %p188
      %p190 = scmp.ne.s32.totalorder %s176, %s177
      %p191 = scmp.eq.s32.totalorder %s24, 1
      %p192 = por %p190, %p191
      %p194 = scmp.ne.s32.totalorder %s177, %s193
      %p195 = scmp.eq.s32.totalorder %s24, 0
      %p196 = por %p194, %p195
      %s197 = ssub.s32 %s25, %s37
      %s198 = ssub.s32 %s26, %s33
      %s199 = sor.u32 %s197, %s198
      %p200 = scmp.eq.s32.totalorder %s199, 0
      %s202 = sadd.s32 %s201, 1
      %s203 = scalar_select %p200, %s201, %s202
      %p206 = pneg %p200
      %p207 = scmp.eq.s32.totalorder %s18, 1
      %p208 = por %p206, %p207
      %p209 = scmp.ne.s32.totalorder %s201, %s204
      %p210 = scmp.eq.s32.totalorder %s18, 0
      %p211 = por %p209, %p210
      %p212 = scmp.ne.s32.totalorder %s201, %s204
      %p213 = scmp.eq.s32.totalorder %s23, 1
      %p214 = por %p212, %p213
      %p215 = scmp.ne.s32.totalorder %s204, %s205
      %p216 = scmp.eq.s32.totalorder %s23, 0
      %p217 = por %p215, %p216
      %p218 = scmp.ne.s32.totalorder %s204, %s205
      %p219 = scmp.eq.s32.totalorder %s24, 1
      %p220 = por %p218, %p219
      %p222 = scmp.ne.s32.totalorder %s205, %s221
      %p223 = scmp.eq.s32.totalorder %s24, 0
      %p224 = por %p222, %p223
      %p225 = scmp.le.s32.totalorder 1, %s18
      %p226 = scmp.lt.s32.totalorder %s18, 3
      %p227 = pnand %p225, %p226
      %p228 = pneg %p227
      // Predicated region
      $region9: #{self_attn.1} parent=5 // pred_check
        _
      $region10: #{self_attn.1} parent=5 // pred_check_branch
        %230 = sbr.rel (%p227) target = $region12
      $region11: #{self_attn.1} parent=5 // pred_region
        %s231 = ssub.s32 %s18, 1
        // Predicated region
        $region13: #{self_attn.1} parent=11 // pred_check
          %p232 = pneg %p77
        $region14: #{self_attn.1} parent=11 // pred_check_branch
          %234 = sbr.rel (%p232) target = $region16
        $region15: #{self_attn.1} parent=11 // pred_region
          _
        $region16: #{self_attn.1} parent=11 // pred_fallthru
          _
        // Predicated region
        $region17: #{self_attn.1} parent=11 // pred_check
          %p235 = pneg %p98
        $region18: #{self_attn.1} parent=11 // pred_check_branch
          %237 = sbr.rel (%p235) target = $region20
        $region19: #{self_attn.1} parent=11 // pred_region
          _
        $region20: #{self_attn.1} parent=11 // pred_fallthru
          _
        // Predicated region
        $region21: #{self_attn.1} parent=11 // pred_check
          %p238 = pneg %p119
        $region22: #{self_attn.1} parent=11 // pred_check_branch
          %240 = sbr.rel (%p238) target = $region24
        $region23: #{self_attn.1} parent=11 // pred_region
          _
        $region24: #{self_attn.1} parent=11 // pred_fallthru
          _
        // Predicated region
        $region25: #{self_attn.1} parent=11 // pred_check
          %p241 = pneg %p140
        $region26: #{self_attn.1} parent=11 // pred_check_branch
          %243 = sbr.rel (%p241) target = $region28
        $region27: #{self_attn.1} parent=11 // pred_region
          _
        $region28: #{self_attn.1} parent=11 // pred_fallthru
          _
        // Predicated region
        $region29: #{self_attn.1} parent=11 // pred_check
          %p244 = pneg %p161
        $region30: #{self_attn.1} parent=11 // pred_check_branch
          %246 = sbr.rel (%p244) target = $region32
        $region31: #{self_attn.1} parent=11 // pred_region
          _
        $region32: #{self_attn.1} parent=11 // pred_fallthru
          _
      $region12: #{self_attn.1} parent=5 // pred_fallthru
        _
      %p247 = scmp.lt.s32.totalorder %s18, 2
      // Predicated region
      $region33: #{self_attn.1} parent=5 // pred_check
        %p248 = pneg %p247
      $region34: #{self_attn.1} parent=5 // pred_check_branch
        %250 = sbr.rel (%p248) target = $region36
      $region35: #{self_attn.1} parent=5 // pred_region
        // Predicated region
        $region37: #{self_attn.1} parent=35 // pred_check
          %p251 = pneg %p50
        $region38: #{self_attn.1} parent=35 // pred_check_branch
          %253 = sbr.rel (%p251) target = $region40
        $region39: #{self_attn.1} parent=35 // pred_region
          %p254 = scmp.lt.s32.totalorder %s25, 1
          %s255 = scalar_select %p254, %s25, 1
          %s256 = smul.addr %s255, 8
          %s257 = smul.addr %s256, 8
          %s258 = scalar_lea.vmem %s0, %s257
        $region40: #{self_attn.1} parent=35 // pred_fallthru
          _
      $region36: #{self_attn.1} parent=5 // pred_fallthru
        _
      %p259 = scmp.le.s32.totalorder 1, %s18
      %p260 = scmp.lt.s32.totalorder %s18, 3
      %p261 = pnand %p259, %p260
      %p262 = pneg %p261
      // Predicated region
      $region41: #{self_attn.1} parent=5 // pred_check
        _
      $region42: #{self_attn.1} parent=5 // pred_check_branch
        %264 = sbr.rel (%p261) target = $region44
      $region43: #{self_attn.1} parent=5 // pred_region
        %s265 = ssub.s32 %s18, 1
        %p266 = scmp.lt.s32.totalorder %s27, 1
        %s267 = scalar_select %p266, %s27, 1
        %s268 = smul.addr %s267, 8
        %s269 = smul.addr %s268, 8
        %s270 = scalar_lea.vmem %s0, %s269
        %p271 = pneg %p56
        %p272 = pneg %p53
        %p273 = pneg %p77
        %p274 = pneg %p74
        %p275 = pneg %p98
        %p276 = pneg %p95
        %p277 = pneg %p119
        %p278 = pneg %p116
        %p279 = pneg %p140
        %p280 = pneg %p137
        %p281 = pneg %p161
        %p282 = pneg %p158
        %p283 = pneg %p189
        %p284 = pneg %p186
        %s285 = smul.u32 2, %s28
        %p286 = scmp.lt.s32.totalorder %s27, 1
        %s287 = scalar_select %p286, %s27, 1
        %p288 = scmp.lt.s32.totalorder %s285, 1
        %s289 = scalar_select %p288, %s285, 1
        %s290 = smul.addr %s287, 8
        %s291 = sadd.s32 %s289, %s290
        %s292 = smul.addr %s291, 8
        %s293 = scalar_lea.vmem %s6, %s292
        %p294 = pneg %p217
        %p295 = pneg %p214
        %s296 = sand.u32 %s204, 1
        %s297 = scalar_lea.sflag [#allocation4], %s296
        %s298 = sand.u32 %s204, 1
        %s299 = smul.addr %s298, 512
        %s300 = scalar_lea.vmem [#allocation3], %s299
        %p301 = scmp.lt.s32.totalorder %s27, 1
        %s302 = scalar_select %p301, %s27, 1
        %s303 = smul.addr %s302, 8
        %s304 = smul.addr %s303, 8
        %s305 = scalar_lea.vmem %s0, %s304
        %s306 = smul.u32 2, %s28
        %p307 = scmp.lt.s32.totalorder %s27, 1
        %s308 = scalar_select %p307, %s27, 1
        %p309 = scmp.lt.s32.totalorder %s306, 1
        %s310 = scalar_select %p309, %s306, 1
        %s311 = smul.addr %s308, 8
        %s312 = sadd.s32 %s310, %s311
        %s313 = smul.addr %s312, 8
        %s314 = scalar_lea.vmem %s6, %s313
        %s315 = smul.u32 2, %s28
        %s316 = smul.u32 32, %s28
        %v318 = vld [vmem:[%s305] sm:$0xff]
        %v319 = vld [vmem:[%s305 + $0x8] sm:$0xff]
        %v320 = vld [vmem:[%s305 + $0x10] sm:$0xff]
        %v321 = vld [vmem:[%s305 + $0x18] sm:$0xff]
        %v322 = vld [vmem:[%s305 + $0x20] sm:$0xff]
        %v323 = vld [vmem:[%s305 + $0x28] sm:$0xff]
        %v324 = vld [vmem:[%s305 + $0x30] sm:$0xff]
        %v325 = vld [vmem:[%s305 + $0x38] sm:$0xff]
        %v326 = vpack.c.bf16 %v320, %v318
        %v327 = vpack.c.bf16 %v321, %v319
        %v328 = vpack.c.bf16 %v324, %v322
        %v329 = vpack.c.bf16 %v325, %v323
        %v330 = vld [vmem:[%s1] sm:$0xff]
        %v331 = vld [vmem:[%s1 + $0x8] sm:$0xff]
        %v332 = vld [vmem:[%s1 + $0x10] sm:$0xff]
        %v333 = vld [vmem:[%s1 + $0x18] sm:$0xff]
        %v334 = vld [vmem:[%s2] sm:$0xff]
        %v335 = vld [vmem:[%s2 + $0x8] sm:$0xff]
        %v336 = vld [vmem:[%s2 + $0x10] sm:$0xff]
        %v337 = vld [vmem:[%s2 + $0x18] sm:$0xff]
        %339 = vset.pattern.permute.xlu0 0
        %340 = vperm.xlu0 %339, %v334
        %v341 = vpop.permute.xlu0 %340
        %344 = vset.pattern.permute.xlu0 0
        %345 = vperm.xlu0 %344, %v335
        %v346 = vpop.permute.xlu0 %345
        %349 = vset.pattern.permute.xlu0 0
        %350 = vperm.xlu0 %349, %v336
        %v351 = vpop.permute.xlu0 %350
        %354 = vset.pattern.permute.xlu0 0
        %355 = vperm.xlu0 %354, %v337
        %v356 = vpop.permute.xlu0 %355
        %vm358 = vcmask 261120
        %v360 = vsel %vm358, %v330, 0
        %v363 = vsel %vm358, %v331, 0
        %v366 = vsel %vm358, %v332, 0
        %v369 = vsel %vm358, %v333, 0
        %371 = vmatprep.subr.mxu0 0.0
        %372 = vmatpush1.msra.mxu0 0.0
        %373 = vmatprep.subr.mxu0 0.0
        %374 = vmatpush1.msra.mxu0 0.0
        %375 = vmatprep.subr.mxu0 0.0
        %376 = vmatpush1.msra.mxu0 0.0
        %377 = vmatprep.subr.mxu0 0.0
        %378 = vmatpush1.msra.mxu0 0.0
        %379 = vmatprep.subr.mxu0 0.0
        %380 = vmatpush1.msra.mxu0 0.0
        %381 = vmatprep.subr.mxu0 0.0
        %382 = vmatpush1.msra.mxu0 0.0
        %383 = vmatprep.subr.mxu0 0.0
        %384 = vmatpush1.msra.mxu0 0.0
        %385 = vmatprep.subr.mxu0 0.0
        %386 = vmatpush1.msra.mxu0 0.0
        %387 = vmatprep.subr.mxu0 0.0
        %388 = vmatpush1.msra.mxu0 0.0
        %389 = vmatprep.subr.mxu0 0.0
        %390 = vmatpush1.msra.mxu0 0.0
        %391 = vmatprep.subr.mxu0 0.0
        %392 = vmatpush1.msra.mxu0 0.0
        %393 = vmatprep.subr.mxu0 0.0
        %394 = vmatpush1.msra.mxu0 0.0
        %395 = vmatprep.subr.mxu0 %v325
        %396 = vmatpush1.msra.mxu0 %v324
        %397 = vmatprep.subr.mxu0 %v323
        %398 = vmatpush1.msra.mxu0 %v322
        %399 = vmatprep.subr.mxu0 %v321
        %400 = vmatpush1.msra.mxu0 %v320
        %401 = vmatprep.subr.mxu0 %v319
        %402 = vmatpush1.msra.mxu0 %v318
        %403 = vmatprep.subr.mxu0 0.0
        %404 = vmatpush2.msra.mxu0 0.0
        %405 = vmatprep.subr.mxu0 0.0
        %406 = vmatpush2.msra.mxu0 0.0
        %407 = vmatprep.subr.mxu0 0.0
        %408 = vmatpush2.msra.mxu0 0.0
        %409 = vmatprep.subr.mxu0 0.0
        %410 = vmatpush2.msra.mxu0 0.0
        %411 = vmatprep.subr.mxu0 0.0
        %412 = vmatpush2.msra.mxu0 0.0
        %413 = vmatprep.subr.mxu0 0.0
        %414 = vmatpush2.msra.mxu0 0.0
        %415 = vmatprep.subr.mxu0 0.0
        %416 = vmatpush2.msra.mxu0 0.0
        %417 = vmatprep.subr.mxu0 0.0
        %418 = vmatpush2.msra.mxu0 0.0
        %419 = vmatprep.subr.mxu0 0.0
        %420 = vmatpush2.msra.mxu0 0.0
        %421 = vmatprep.subr.mxu0 0.0
        %422 = vmatpush2.msra.mxu0 0.0
        %423 = vmatprep.subr.mxu0 0.0
        %424 = vmatpush2.msra.mxu0 0.0
        %425 = vmatprep.subr.mxu0 0.0
        %426 = vmatpush2.msra.mxu0 0.0
        %427 = vmatprep.subr.mxu0 0.0
        %428 = vmatpush2.msra.mxu0 0.0
        %429 = vmatprep.subr.mxu0 0.0
        %430 = vmatpush2.msra.mxu0 0.0
        %431 = vmatprep.subr.mxu0 0.0
        %432 = vmatpush2.msra.mxu0 0.0
        %433 = vmatprep.subr.mxu0 0.0
        %434 = vmatpush2.msra.mxu0 0.0
        %435 = vmatprep.mubr.f32.mxu0 0.0
        %436 = vmatmul.mubr.f32.gmra.mxu0 %v360
        %v437 = vpop.f32.mrf.mxu0
        %v438 = vadd.f32 %v341, %v437
        %v439 = vpop.f32.mrf.mxu0
        %v440 = vadd.f32 %v341, %v439
        %441 = vmatprep.mubr.f32.mxu0 0.0
        %442 = vmatmul.mubr.f32.gmra.mxu0 %v363
        %v443 = vpop.f32.mrf.mxu0
        %v444 = vadd.f32 %v346, %v443
        %v445 = vpop.f32.mrf.mxu0
        %v446 = vadd.f32 %v346, %v445
        %447 = vmatprep.mubr.f32.mxu0 0.0
        %448 = vmatmul.mubr.f32.gmra.mxu0 %v366
        %v449 = vpop.f32.mrf.mxu0
        %v450 = vadd.f32 %v351, %v449
        %v451 = vpop.f32.mrf.mxu0
        %v452 = vadd.f32 %v351, %v451
        %453 = vmatprep.mubr.f32.mxu0 0.0
        %454 = vmatmul.mubr.f32.gmra.mxu0 %v369
        %v455 = vpop.f32.mrf.mxu0
        %v456 = vadd.f32 %v356, %v455
        %v457 = vpop.f32.mrf.mxu0
        %v458 = vadd.f32 %v356, %v457
        %459 = vdwg.mxu0
        %v460 = vpack.c.bf16 %v444, %v438
        %v461 = vpack.c.bf16 %v446, %v440
        %v462 = vpack.c.bf16 %v456, %v450
        %v463 = vpack.c.bf16 %v458, %v452
        %464 = vxpose.xlu0.c.b16.start [1/8] %v460, 128
        %465 = vxpose.xlu0.c.b16.cont [2/8] %v462, 128
        %466 = vxpose.xlu0.c.b16.cont [3/8] 0, 128
        %467 = vxpose.xlu0.c.b16.cont [4/8] 0, 128
        %468 = vxpose.xlu0.c.b16.cont [5/8] 0, 128
        %469 = vxpose.xlu0.c.b16.cont [6/8] 0, 128
        %470 = vxpose.xlu0.c.b16.cont [7/8] 0, 128
        %471 = vxpose.xlu0.c.b16.end [8/8] 0, 128
        %v472 = vpop.trf.xlu0
        %v473 = vpop.trf.xlu0
        %v474 = vpop.trf.xlu0
        %v475 = vpop.trf.xlu0
        %v476 = vpop.trf.xlu0
        %v477 = vpop.trf.xlu0
        %v478 = vpop.trf.xlu0
        %v479 = vpop.trf.xlu0
        %480 = vxpose.xlu0.c.b16.start [1/8] %v461, 128
        %481 = vxpose.xlu0.c.b16.cont [2/8] %v463, 128
        %482 = vxpose.xlu0.c.b16.cont [3/8] 0, 128
        %483 = vxpose.xlu0.c.b16.cont [4/8] 0, 128
        %484 = vxpose.xlu0.c.b16.cont [5/8] 0, 128
        %485 = vxpose.xlu0.c.b16.cont [6/8] 0, 128
        %486 = vxpose.xlu0.c.b16.cont [7/8] 0, 128
        %487 = vxpose.xlu0.c.b16.end [8/8] 0, 128
        %v488 = vpop.trf.xlu0
        %v489 = vpop.trf.xlu0
        %v490 = vpop.trf.xlu0
        %v491 = vpop.trf.xlu0
        %v492 = vpop.trf.xlu0
        %v493 = vpop.trf.xlu0
        %v494 = vpop.trf.xlu0
        %v495 = vpop.trf.xlu0
        %v497 = vsel %vm358, %v472, 0
        %v500 = vsel %vm358, %v473, 0
        %v503 = vsel %vm358, %v474, 0
        %v506 = vsel %vm358, %v475, 0
        %v509 = vsel %vm358, %v476, 0
        %v512 = vsel %vm358, %v477, 0
        %v515 = vsel %vm358, %v478, 0
        %v518 = vsel %vm358, %v479, 0
        %v521 = vsel %vm358, %v488, 0
        %v524 = vsel %vm358, %v489, 0
        %v527 = vsel %vm358, %v490, 0
        %v530 = vsel %vm358, %v491, 0
        %v533 = vsel %vm358, %v492, 0
        %v536 = vsel %vm358, %v493, 0
        %v539 = vsel %vm358, %v494, 0
        %v542 = vsel %vm358, %v495, 0
        %544 = vmatprep.subr.bf16.mxu0 0
        %545 = vmatpush1.bf16.msra.mxu0 0
        %546 = vmatprep.subr.bf16.mxu0 0
        %547 = vmatpush1.bf16.msra.mxu0 0
        %548 = vmatprep.subr.bf16.mxu0 0
        %549 = vmatpush1.bf16.msra.mxu0 0
        %550 = vmatprep.subr.bf16.mxu0 0
        %551 = vmatpush1.bf16.msra.mxu0 0
        %552 = vmatprep.subr.bf16.mxu0 0
        %553 = vmatpush1.bf16.msra.mxu0 0
        %554 = vmatprep.subr.bf16.mxu0 0
        %555 = vmatpush1.bf16.msra.mxu0 0
        %556 = vmatprep.subr.bf16.mxu0 %v329
        %557 = vmatpush1.bf16.msra.mxu0 %v328
        %558 = vmatprep.subr.bf16.mxu0 %v327
        %559 = vmatpush1.bf16.msra.mxu0 %v326
        %560 = vmatprep.subr.bf16.mxu0 0
        %561 = vmatpush2.bf16.msra.mxu0 0
        %562 = vmatprep.subr.bf16.mxu0 0
        %563 = vmatpush2.bf16.msra.mxu0 0
        %564 = vmatprep.subr.bf16.mxu0 0
        %565 = vmatpush2.bf16.msra.mxu0 0
        %566 = vmatprep.subr.bf16.mxu0 0
        %567 = vmatpush2.bf16.msra.mxu0 0
        %568 = vmatprep.subr.bf16.mxu0 0
        %569 = vmatpush2.bf16.msra.mxu0 0
        %570 = vmatprep.subr.bf16.mxu0 0
        %571 = vmatpush2.bf16.msra.mxu0 0
        %572 = vmatprep.subr.bf16.mxu0 0
        %573 = vmatpush2.bf16.msra.mxu0 0
        %574 = vmatprep.subr.bf16.mxu0 0
        %575 = vmatpush2.bf16.msra.mxu0 0
        %576 = vmatprep.mubr.bf16.mxu0 0
        %577 = vmatmul.mubr.bf16.gmra.mxu0 %v497
        %v578 = vpop.f32.mrf.mxu0
        %v579 = vadd.f32 0.0, %v578
        %v580 = vpop.f32.mrf.mxu0
        %v581 = vadd.f32 0.0, %v580
        %v582 = vpop.f32.mrf.mxu0
        %v583 = vadd.f32 0.0, %v582
        %v584 = vpop.f32.mrf.mxu0
        %v585 = vadd.f32 0.0, %v584
        %586 = vmatprep.mubr.bf16.mxu0 0
        %587 = vmatmul.mubr.bf16.gmra.mxu0 %v500
        %v588 = vpop.f32.mrf.mxu0
        %v589 = vadd.f32 0.0, %v588
        %v590 = vpop.f32.mrf.mxu0
        %v591 = vadd.f32 0.0, %v590
        %v592 = vpop.f32.mrf.mxu0
        %v593 = vadd.f32 0.0, %v592
        %v594 = vpop.f32.mrf.mxu0
        %v595 = vadd.f32 0.0, %v594
        %596 = vmatprep.mubr.bf16.mxu0 0
        %597 = vmatmul.mubr.bf16.gmra.mxu0 %v503
        %v598 = vpop.f32.mrf.mxu0
        %v599 = vadd.f32 0.0, %v598
        %v600 = vpop.f32.mrf.mxu0
        %v601 = vadd.f32 0.0, %v600
        %v602 = vpop.f32.mrf.mxu0
        %v603 = vadd.f32 0.0, %v602
        %v604 = vpop.f32.mrf.mxu0
        %v605 = vadd.f32 0.0, %v604
        %606 = vmatprep.mubr.bf16.mxu0 0
        %607 = vmatmul.mubr.bf16.gmra.mxu0 %v506
        %v608 = vpop.f32.mrf.mxu0
        %v609 = vadd.f32 0.0, %v608
        %v610 = vpop.f32.mrf.mxu0
        %v611 = vadd.f32 0.0, %v610
        %v612 = vpop.f32.mrf.mxu0
        %v613 = vadd.f32 0.0, %v612
        %v614 = vpop.f32.mrf.mxu0
        %v615 = vadd.f32 0.0, %v614
        %616 = vmatprep.mubr.bf16.mxu0 0
        %617 = vmatmul.mubr.bf16.gmra.mxu0 %v509
        %v618 = vpop.f32.mrf.mxu0
        %v619 = vadd.f32 0.0, %v618
        %v620 = vpop.f32.mrf.mxu0
        %v621 = vadd.f32 0.0, %v620
        %v622 = vpop.f32.mrf.mxu0
        %v623 = vadd.f32 0.0, %v622
        %v624 = vpop.f32.mrf.mxu0
        %v625 = vadd.f32 0.0, %v624
        %626 = vmatprep.mubr.bf16.mxu0 0
        %627 = vmatmul.mubr.bf16.gmra.mxu0 %v512
        %v628 = vpop.f32.mrf.mxu0
        %v629 = vadd.f32 0.0, %v628
        %v630 = vpop.f32.mrf.mxu0
        %v631 = vadd.f32 0.0, %v630
        %v632 = vpop.f32.mrf.mxu0
        %v633 = vadd.f32 0.0, %v632
        %v634 = vpop.f32.mrf.mxu0
        %v635 = vadd.f32 0.0, %v634
        %636 = vmatprep.mubr.bf16.mxu0 0
        %637 = vmatmul.mubr.bf16.gmra.mxu0 %v515
        %v638 = vpop.f32.mrf.mxu0
        %v639 = vadd.f32 0.0, %v638
        %v640 = vpop.f32.mrf.mxu0
        %v641 = vadd.f32 0.0, %v640
        %v642 = vpop.f32.mrf.mxu0
        %v643 = vadd.f32 0.0, %v642
        %v644 = vpop.f32.mrf.mxu0
        %v645 = vadd.f32 0.0, %v644
        %646 = vmatprep.mubr.bf16.mxu0 0
        %647 = vmatmul.mubr.bf16.gmra.mxu0 %v518
        %v648 = vpop.f32.mrf.mxu0
        %v649 = vadd.f32 0.0, %v648
        %v650 = vpop.f32.mrf.mxu0
        %v651 = vadd.f32 0.0, %v650
        %v652 = vpop.f32.mrf.mxu0
        %v653 = vadd.f32 0.0, %v652
        %v654 = vpop.f32.mrf.mxu0
        %v655 = vadd.f32 0.0, %v654
        %656 = vmatprep.mubr.bf16.mxu0 0
        %657 = vmatmul.mubr.bf16.gmra.mxu0 %v521
        %v658 = vpop.f32.mrf.mxu0
        %v659 = vadd.f32 0.0, %v658
        %v660 = vpop.f32.mrf.mxu0
        %v661 = vadd.f32 0.0, %v660
        %v662 = vpop.f32.mrf.mxu0
        %v663 = vadd.f32 0.0, %v662
        %v664 = vpop.f32.mrf.mxu0
        %v665 = vadd.f32 0.0, %v664
        %666 = vmatprep.mubr.bf16.mxu0 0
        %667 = vmatmul.mubr.bf16.gmra.mxu0 %v524
        %v668 = vpop.f32.mrf.mxu0
        %v669 = vadd.f32 0.0, %v668
        %v670 = vpop.f32.mrf.mxu0
        %v671 = vadd.f32 0.0, %v670
        %v672 = vpop.f32.mrf.mxu0
        %v673 = vadd.f32 0.0, %v672
        %v674 = vpop.f32.mrf.mxu0
        %v675 = vadd.f32 0.0, %v674
        %676 = vmatprep.mubr.bf16.mxu0 0
        %677 = vmatmul.mubr.bf16.gmra.mxu0 %v527
        %v678 = vpop.f32.mrf.mxu0
        %v679 = vadd.f32 0.0, %v678
        %v680 = vpop.f32.mrf.mxu0
        %v681 = vadd.f32 0.0, %v680
        %v682 = vpop.f32.mrf.mxu0
        %v683 = vadd.f32 0.0, %v682
        %v684 = vpop.f32.mrf.mxu0
        %v685 = vadd.f32 0.0, %v684
        %686 = vmatprep.mubr.bf16.mxu0 0
        %687 = vmatmul.mubr.bf16.gmra.mxu0 %v530
        %v688 = vpop.f32.mrf.mxu0
        %v689 = vadd.f32 0.0, %v688
        %v690 = vpop.f32.mrf.mxu0
        %v691 = vadd.f32 0.0, %v690
        %v692 = vpop.f32.mrf.mxu0
        %v693 = vadd.f32 0.0, %v692
        %v694 = vpop.f32.mrf.mxu0
        %v695 = vadd.f32 0.0, %v694
        %696 = vmatprep.mubr.bf16.mxu0 0
        %697 = vmatmul.mubr.bf16.gmra.mxu0 %v533
        %v698 = vpop.f32.mrf.mxu0
        %v699 = vadd.f32 0.0, %v698
        %v700 = vpop.f32.mrf.mxu0
        %v701 = vadd.f32 0.0, %v700
        %v702 = vpop.f32.mrf.mxu0
        %v703 = vadd.f32 0.0, %v702
        %v704 = vpop.f32.mrf.mxu0
        %v705 = vadd.f32 0.0, %v704
        %706 = vmatprep.mubr.bf16.mxu0 0
        %707 = vmatmul.mubr.bf16.gmra.mxu0 %v536
        %v708 = vpop.f32.mrf.mxu0
        %v709 = vadd.f32 0.0, %v708
        %v710 = vpop.f32.mrf.mxu0
        %v711 = vadd.f32 0.0, %v710
        %v712 = vpop.f32.mrf.mxu0
        %v713 = vadd.f32 0.0, %v712
        %v714 = vpop.f32.mrf.mxu0
        %v715 = vadd.f32 0.0, %v714
        %716 = vmatprep.mubr.bf16.mxu0 0
        %717 = vmatmul.mubr.bf16.gmra.mxu0 %v539
        %v718 = vpop.f32.mrf.mxu0
        %v719 = vadd.f32 0.0, %v718
        %v720 = vpop.f32.mrf.mxu0
        %v721 = vadd.f32 0.0, %v720
        %v722 = vpop.f32.mrf.mxu0
        %v723 = vadd.f32 0.0, %v722
        %v724 = vpop.f32.mrf.mxu0
        %v725 = vadd.f32 0.0, %v724
        %726 = vmatprep.mubr.bf16.mxu0 0
        %727 = vmatmul.mubr.bf16.gmra.mxu0 %v542
        %v728 = vpop.f32.mrf.mxu0
        %v729 = vadd.f32 0.0, %v728
        %v730 = vpop.f32.mrf.mxu0
        %v731 = vadd.f32 0.0, %v730
        %v732 = vpop.f32.mrf.mxu0
        %v733 = vadd.f32 0.0, %v732
        %v734 = vpop.f32.mrf.mxu0
        %v735 = vadd.f32 0.0, %v734
        %736 = vdwg.mxu0
        %v737 = vmax.f32 %v579, %v581
        %738 = vmax.xlane.f32.xlu0 %v737
        %v739 = vpop.xlane.xlu0 %738
        %v740 = vmax.f32 %v583, %v585
        %741 = vmax.xlane.f32.xlu0 %v740
        %v742 = vpop.xlane.xlu0 %741
        %v743 = vmax.f32 %v589, %v591
        %744 = vmax.xlane.f32.xlu0 %v743
        %v745 = vpop.xlane.xlu0 %744
        %v746 = vmax.f32 %v593, %v595
        %747 = vmax.xlane.f32.xlu0 %v746
        %v748 = vpop.xlane.xlu0 %747
        %v749 = vmax.f32 %v599, %v601
        %750 = vmax.xlane.f32.xlu0 %v749
        %v751 = vpop.xlane.xlu0 %750
        %v752 = vmax.f32 %v603, %v605
        %753 = vmax.xlane.f32.xlu0 %v752
        %v754 = vpop.xlane.xlu0 %753
        %v755 = vmax.f32 %v609, %v611
        %756 = vmax.xlane.f32.xlu0 %v755
        %v757 = vpop.xlane.xlu0 %756
        %v758 = vmax.f32 %v613, %v615
        %759 = vmax.xlane.f32.xlu0 %v758
        %v760 = vpop.xlane.xlu0 %759
        %v761 = vmax.f32 %v619, %v621
        %762 = vmax.xlane.f32.xlu0 %v761
        %v763 = vpop.xlane.xlu0 %762
        %v764 = vmax.f32 %v623, %v625
        %765 = vmax.xlane.f32.xlu0 %v764
        %v766 = vpop.xlane.xlu0 %765
        %v767 = vmax.f32 %v629, %v631
        %768 = vmax.xlane.f32.xlu0 %v767
        %v769 = vpop.xlane.xlu0 %768
        %v770 = vmax.f32 %v633, %v635
        %771 = vmax.xlane.f32.xlu0 %v770
        %v772 = vpop.xlane.xlu0 %771
        %v773 = vmax.f32 %v639, %v641
        %774 = vmax.xlane.f32.xlu0 %v773
        %v775 = vpop.xlane.xlu0 %774
        %v776 = vmax.f32 %v643, %v645
        %777 = vmax.xlane.f32.xlu0 %v776
        %v778 = vpop.xlane.xlu0 %777
        %v779 = vmax.f32 %v649, %v651
        %780 = vmax.xlane.f32.xlu0 %v779
        %v781 = vpop.xlane.xlu0 %780
        %v782 = vmax.f32 %v653, %v655
        %783 = vmax.xlane.f32.xlu0 %v782
        %v784 = vpop.xlane.xlu0 %783
        %v785 = vmax.f32 %v659, %v661
        %786 = vmax.xlane.f32.xlu0 %v785
        %v787 = vpop.xlane.xlu0 %786
        %v788 = vmax.f32 %v663, %v665
        %789 = vmax.xlane.f32.xlu0 %v788
        %v790 = vpop.xlane.xlu0 %789
        %v791 = vmax.f32 %v669, %v671
        %792 = vmax.xlane.f32.xlu0 %v791
        %v793 = vpop.xlane.xlu0 %792
        %v794 = vmax.f32 %v673, %v675
        %795 = vmax.xlane.f32.xlu0 %v794
        %v796 = vpop.xlane.xlu0 %795
        %v797 = vmax.f32 %v679, %v681
        %798 = vmax.xlane.f32.xlu0 %v797
        %v799 = vpop.xlane.xlu0 %798
        %v800 = vmax.f32 %v683, %v685
        %801 = vmax.xlane.f32.xlu0 %v800
        %v802 = vpop.xlane.xlu0 %801
        %v803 = vmax.f32 %v689, %v691
        %804 = vmax.xlane.f32.xlu0 %v803
        %v805 = vpop.xlane.xlu0 %804
        %v806 = vmax.f32 %v693, %v695
        %807 = vmax.xlane.f32.xlu0 %v806
        %v808 = vpop.xlane.xlu0 %807
        %v809 = vmax.f32 %v699, %v701
        %810 = vmax.xlane.f32.xlu0 %v809
        %v811 = vpop.xlane.xlu0 %810
        %v812 = vmax.f32 %v703, %v705
        %813 = vmax.xlane.f32.xlu0 %v812
        %v814 = vpop.xlane.xlu0 %813
        %v815 = vmax.f32 %v709, %v711
        %816 = vmax.xlane.f32.xlu0 %v815
        %v817 = vpop.xlane.xlu0 %816
        %v818 = vmax.f32 %v713, %v715
        %819 = vmax.xlane.f32.xlu0 %v818
        %v820 = vpop.xlane.xlu0 %819
        %v821 = vmax.f32 %v719, %v721
        %822 = vmax.xlane.f32.xlu0 %v821
        %v823 = vpop.xlane.xlu0 %822
        %v824 = vmax.f32 %v723, %v725
        %825 = vmax.xlane.f32.xlu0 %v824
        %v826 = vpop.xlane.xlu0 %825
        %v827 = vmax.f32 %v729, %v731
        %828 = vmax.xlane.f32.xlu0 %v827
        %v829 = vpop.xlane.xlu0 %828
        %v830 = vmax.f32 %v733, %v735
        %831 = vmax.xlane.f32.xlu0 %v830
        %v832 = vpop.xlane.xlu0 %831
        %v833 = vsub.f32 %v579, %v739
        %v834 = vsub.f32 %v581, %v739
        %v835 = vsub.f32 %v583, %v742
        %v836 = vsub.f32 %v585, %v742
        %v837 = vsub.f32 %v589, %v745
        %v838 = vsub.f32 %v591, %v745
        %v839 = vsub.f32 %v593, %v748
        %v840 = vsub.f32 %v595, %v748
        %v841 = vsub.f32 %v599, %v751
        %v842 = vsub.f32 %v601, %v751
        %v843 = vsub.f32 %v603, %v754
        %v844 = vsub.f32 %v605, %v754
        %v845 = vsub.f32 %v609, %v757
        %v846 = vsub.f32 %v611, %v757
        %v847 = vsub.f32 %v613, %v760
        %v848 = vsub.f32 %v615, %v760
        %v849 = vsub.f32 %v619, %v763
        %v850 = vsub.f32 %v621, %v763
        %v851 = vsub.f32 %v623, %v766
        %v852 = vsub.f32 %v625, %v766
        %v853 = vsub.f32 %v629, %v769
        %v854 = vsub.f32 %v631, %v769
        %v855 = vsub.f32 %v633, %v772
        %v856 = vsub.f32 %v635, %v772
        %v857 = vsub.f32 %v639, %v775
        %v858 = vsub.f32 %v641, %v775
        %v859 = vsub.f32 %v643, %v778
        %v860 = vsub.f32 %v645, %v778
        %v861 = vsub.f32 %v649, %v781
        %v862 = vsub.f32 %v651, %v781
        %v863 = vsub.f32 %v653, %v784
        %v864 = vsub.f32 %v655, %v784
        %v865 = vsub.f32 %v659, %v787
        %v866 = vsub.f32 %v661, %v787
        %v867 = vsub.f32 %v663, %v790
        %v868 = vsub.f32 %v665, %v790
        %v869 = vsub.f32 %v669, %v793
        %v870 = vsub.f32 %v671, %v793
        %v871 = vsub.f32 %v673, %v796
        %v872 = vsub.f32 %v675, %v796
        %v873 = vsub.f32 %v679, %v799
        %v874 = vsub.f32 %v681, %v799
        %v875 = vsub.f32 %v683, %v802
        %v876 = vsub.f32 %v685, %v802
        %v877 = vsub.f32 %v689, %v805
        %v878 = vsub.f32 %v691, %v805
        %v879 = vsub.f32 %v693, %v808
        %v880 = vsub.f32 %v695, %v808
        %v881 = vsub.f32 %v699, %v811
        %v882 = vsub.f32 %v701, %v811
        %v883 = vsub.f32 %v703, %v814
        %v884 = vsub.f32 %v705, %v814
        %v885 = vsub.f32 %v709, %v817
        %v886 = vsub.f32 %v711, %v817
        %v887 = vsub.f32 %v713, %v820
        %v888 = vsub.f32 %v715, %v820
        %v889 = vsub.f32 %v719, %v823
        %v890 = vsub.f32 %v721, %v823
        %v891 = vsub.f32 %v723, %v826
        %v892 = vsub.f32 %v725, %v826
        %v893 = vsub.f32 %v729, %v829
        %v894 = vsub.f32 %v731, %v829
        %v895 = vsub.f32 %v733, %v832
        %v896 = vsub.f32 %v735, %v832
        %v897 = vmul.f32 %v833, 1.442695
        %v898 = vpow.pop %v897
        %v899 = vmul.f32 %v834, 1.442695
        %v900 = vpow.pop %v899
        %v901 = vmul.f32 %v835, 1.442695
        %v902 = vpow.pop %v901
        %v903 = vmul.f32 %v836, 1.442695
        %v904 = vpow.pop %v903
        %v905 = vmul.f32 %v837, 1.442695
        %v906 = vpow.pop %v905
        %v907 = vmul.f32 %v838, 1.442695
        %v908 = vpow.pop %v907
        %v909 = vmul.f32 %v839, 1.442695
        %v910 = vpow.pop %v909
        %v911 = vmul.f32 %v840, 1.442695
        %v912 = vpow.pop %v911
        %v913 = vmul.f32 %v841, 1.442695
        %v914 = vpow.pop %v913
        %v915 = vmul.f32 %v842, 1.442695
        %v916 = vpow.pop %v915
        %v917 = vmul.f32 %v843, 1.442695
        %v918 = vpow.pop %v917
        %v919 = vmul.f32 %v844, 1.442695
        %v920 = vpow.pop %v919
        %v921 = vmul.f32 %v845, 1.442695
        %v922 = vpow.pop %v921
        %v923 = vmul.f32 %v846, 1.442695
        %v924 = vpow.pop %v923
        %v925 = vmul.f32 %v847, 1.442695
        %v926 = vpow.pop %v925
        %v927 = vmul.f32 %v848, 1.442695
        %v928 = vpow.pop %v927
        %v929 = vmul.f32 %v849, 1.442695
        %v930 = vpow.pop %v929
        %v931 = vmul.f32 %v850, 1.442695
        %v932 = vpow.pop %v931
        %v933 = vmul.f32 %v851, 1.442695
        %v934 = vpow.pop %v933
        %v935 = vmul.f32 %v852, 1.442695
        %v936 = vpow.pop %v935
        %v937 = vmul.f32 %v853, 1.442695
        %v938 = vpow.pop %v937
        %v939 = vmul.f32 %v854, 1.442695
        %v940 = vpow.pop %v939
        %v941 = vmul.f32 %v855, 1.442695
        %v942 = vpow.pop %v941
        %v943 = vmul.f32 %v856, 1.442695
        %v944 = vpow.pop %v943
        %v945 = vmul.f32 %v857, 1.442695
        %v946 = vpow.pop %v945
        %v947 = vmul.f32 %v858, 1.442695
        %v948 = vpow.pop %v947
        %v949 = vmul.f32 %v859, 1.442695
        %v950 = vpow.pop %v949
        %v951 = vmul.f32 %v860, 1.442695
        %v952 = vpow.pop %v951
        %v953 = vmul.f32 %v861, 1.442695
        %v954 = vpow.pop %v953
        %v955 = vmul.f32 %v862, 1.442695
        %v956 = vpow.pop %v955
        %v957 = vmul.f32 %v863, 1.442695
        %v958 = vpow.pop %v957
        %v959 = vmul.f32 %v864, 1.442695
        %v960 = vpow.pop %v959
        %v961 = vmul.f32 %v865, 1.442695
        %v962 = vpow.pop %v961
        %v963 = vmul.f32 %v866, 1.442695
        %v964 = vpow.pop %v963
        %v965 = vmul.f32 %v867, 1.442695
        %v966 = vpow.pop %v965
        %v967 = vmul.f32 %v868, 1.442695
        %v968 = vpow.pop %v967
        %v969 = vmul.f32 %v869, 1.442695
        %v970 = vpow.pop %v969
        %v971 = vmul.f32 %v870, 1.442695
        %v972 = vpow.pop %v971
        %v973 = vmul.f32 %v871, 1.442695
        %v974 = vpow.pop %v973
        %v975 = vmul.f32 %v872, 1.442695
        %v976 = vpow.pop %v975
        %v977 = vmul.f32 %v873, 1.442695
        %v978 = vpow.pop %v977
        %v979 = vmul.f32 %v874, 1.442695
        %v980 = vpow.pop %v979
        %v981 = vmul.f32 %v875, 1.442695
        %v982 = vpow.pop %v981
        %v983 = vmul.f32 %v876, 1.442695
        %v984 = vpow.pop %v983
        %v985 = vmul.f32 %v877, 1.442695
        %v986 = vpow.pop %v985
        %v987 = vmul.f32 %v878, 1.442695
        %v988 = vpow.pop %v987
        %v989 = vmul.f32 %v879, 1.442695
        %v990 = vpow.pop %v989
        %v991 = vmul.f32 %v880, 1.442695
        %v992 = vpow.pop %v991
        %v993 = vmul.f32 %v881, 1.442695
        %v994 = vpow.pop %v993
        %v995 = vmul.f32 %v882, 1.442695
        %v996 = vpow.pop %v995
        %v997 = vmul.f32 %v883, 1.442695
        %v998 = vpow.pop %v997
        %v999 = vmul.f32 %v884, 1.442695
        %v1000 = vpow.pop %v999
        %v1001 = vmul.f32 %v885, 1.442695
        %v1002 = vpow.pop %v1001
        %v1003 = vmul.f32 %v886, 1.442695
        %v1004 = vpow.pop %v1003
        %v1005 = vmul.f32 %v887, 1.442695
        %v1006 = vpow.pop %v1005
        %v1007 = vmul.f32 %v888, 1.442695
        %v1008 = vpow.pop %v1007
        %v1009 = vmul.f32 %v889, 1.442695
        %v1010 = vpow.pop %v1009
        %v1011 = vmul.f32 %v890, 1.442695
        %v1012 = vpow.pop %v1011
        %v1013 = vmul.f32 %v891, 1.442695
        %v1014 = vpow.pop %v1013
        %v1015 = vmul.f32 %v892, 1.442695
        %v1016 = vpow.pop %v1015
        %v1017 = vmul.f32 %v893, 1.442695
        %v1018 = vpow.pop %v1017
        %v1019 = vmul.f32 %v894, 1.442695
        %v1020 = vpow.pop %v1019
        %v1021 = vmul.f32 %v895, 1.442695
        %v1022 = vpow.pop %v1021
        %v1023 = vmul.f32 %v896, 1.442695
        %v1024 = vpow.pop %v1023
        %v1025 = vadd.f32 %v898, %v900
        %1026 = vadd.xlane.f32.xlu0 %v1025
        %v1027 = vpop.xlane.xlu0 %1026
        %v1028 = vadd.f32 %v902, %v904
        %1029 = vadd.xlane.f32.xlu0 %v1028
        %v1030 = vpop.xlane.xlu0 %1029
        %v1031 = vadd.f32 %v906, %v908
        %1032 = vadd.xlane.f32.xlu0 %v1031
        %v1033 = vpop.xlane.xlu0 %1032
        %v1034 = vadd.f32 %v910, %v912
        %1035 = vadd.xlane.f32.xlu0 %v1034
        %v1036 = vpop.xlane.xlu0 %1035
        %v1037 = vadd.f32 %v914, %v916
        %1038 = vadd.xlane.f32.xlu0 %v1037
        %v1039 = vpop.xlane.xlu0 %1038
        %v1040 = vadd.f32 %v918, %v920
        %1041 = vadd.xlane.f32.xlu0 %v1040
        %v1042 = vpop.xlane.xlu0 %1041
        %v1043 = vadd.f32 %v922, %v924
        %1044 = vadd.xlane.f32.xlu0 %v1043
        %v1045 = vpop.xlane.xlu0 %1044
        %v1046 = vadd.f32 %v926, %v928
        %1047 = vadd.xlane.f32.xlu0 %v1046
        %v1048 = vpop.xlane.xlu0 %1047
        %v1049 = vadd.f32 %v930, %v932
        %1050 = vadd.xlane.f32.xlu0 %v1049
        %v1051 = vpop.xlane.xlu0 %1050
        %v1052 = vadd.f32 %v934, %v936
        %1053 = vadd.xlane.f32.xlu0 %v1052
        %v1054 = vpop.xlane.xlu0 %1053
        %v1055 = vadd.f32 %v938, %v940
        %1056 = vadd.xlane.f32.xlu0 %v1055
        %v1057 = vpop.xlane.xlu0 %1056
        %v1058 = vadd.f32 %v942, %v944
        %1059 = vadd.xlane.f32.xlu0 %v1058
        %v1060 = vpop.xlane.xlu0 %1059
        %v1061 = vadd.f32 %v946, %v948
        %1062 = vadd.xlane.f32.xlu0 %v1061
        %v1063 = vpop.xlane.xlu0 %1062
        %v1064 = vadd.f32 %v950, %v952
        %1065 = vadd.xlane.f32.xlu0 %v1064
        %v1066 = vpop.xlane.xlu0 %1065
        %v1067 = vadd.f32 %v954, %v956
        %1068 = vadd.xlane.f32.xlu0 %v1067
        %v1069 = vpop.xlane.xlu0 %1068
        %v1070 = vadd.f32 %v958, %v960
        %1071 = vadd.xlane.f32.xlu0 %v1070
        %v1072 = vpop.xlane.xlu0 %1071
        %v1073 = vadd.f32 %v962, %v964
        %1074 = vadd.xlane.f32.xlu0 %v1073
        %v1075 = vpop.xlane.xlu0 %1074
        %v1076 = vadd.f32 %v966, %v968
        %1077 = vadd.xlane.f32.xlu0 %v1076
        %v1078 = vpop.xlane.xlu0 %1077
        %v1079 = vadd.f32 %v970, %v972
        %1080 = vadd.xlane.f32.xlu0 %v1079
        %v1081 = vpop.xlane.xlu0 %1080
        %v1082 = vadd.f32 %v974, %v976
        %1083 = vadd.xlane.f32.xlu0 %v1082
        %v1084 = vpop.xlane.xlu0 %1083
        %v1085 = vadd.f32 %v978, %v980
        %1086 = vadd.xlane.f32.xlu0 %v1085
        %v1087 = vpop.xlane.xlu0 %1086
        %v1088 = vadd.f32 %v982, %v984
        %1089 = vadd.xlane.f32.xlu0 %v1088
        %v1090 = vpop.xlane.xlu0 %1089
        %v1091 = vadd.f32 %v986, %v988
        %1092 = vadd.xlane.f32.xlu0 %v1091
        %v1093 = vpop.xlane.xlu0 %1092
        %v1094 = vadd.f32 %v990, %v992
        %1095 = vadd.xlane.f32.xlu0 %v1094
        %v1096 = vpop.xlane.xlu0 %1095
        %v1097 = vadd.f32 %v994, %v996
        %1098 = vadd.xlane.f32.xlu0 %v1097
        %v1099 = vpop.xlane.xlu0 %1098
        %v1100 = vadd.f32 %v998, %v1000
        %1101 = vadd.xlane.f32.xlu0 %v1100
        %v1102 = vpop.xlane.xlu0 %1101
        %v1103 = vadd.f32 %v1002, %v1004
        %1104 = vadd.xlane.f32.xlu0 %v1103
        %v1105 = vpop.xlane.xlu0 %1104
        %v1106 = vadd.f32 %v1006, %v1008
        %1107 = vadd.xlane.f32.xlu0 %v1106
        %v1108 = vpop.xlane.xlu0 %1107
        %v1109 = vadd.f32 %v1010, %v1012
        %1110 = vadd.xlane.f32.xlu0 %v1109
        %v1111 = vpop.xlane.xlu0 %1110
        %v1112 = vadd.f32 %v1014, %v1016
        %1113 = vadd.xlane.f32.xlu0 %v1112
        %v1114 = vpop.xlane.xlu0 %1113
        %v1115 = vadd.f32 %v1018, %v1020
        %1116 = vadd.xlane.f32.xlu0 %v1115
        %v1117 = vpop.xlane.xlu0 %1116
        %v1118 = vadd.f32 %v1022, %v1024
        %1119 = vadd.xlane.f32.xlu0 %v1118
        %v1120 = vpop.xlane.xlu0 %1119
        %v1121 = vrcp.pop %v1027
        %v1122 = vrcp.pop %v1030
        %v1123 = vrcp.pop %v1033
        %v1124 = vrcp.pop %v1036
        %v1125 = vrcp.pop %v1039
        %v1126 = vrcp.pop %v1042
        %v1127 = vrcp.pop %v1045
        %v1128 = vrcp.pop %v1048
        %v1129 = vrcp.pop %v1051
        %v1130 = vrcp.pop %v1054
        %v1131 = vrcp.pop %v1057
        %v1132 = vrcp.pop %v1060
        %v1133 = vrcp.pop %v1063
        %v1134 = vrcp.pop %v1066
        %v1135 = vrcp.pop %v1069
        %v1136 = vrcp.pop %v1072
        %v1137 = vrcp.pop %v1075
        %v1138 = vrcp.pop %v1078
        %v1139 = vrcp.pop %v1081
        %v1140 = vrcp.pop %v1084
        %v1141 = vrcp.pop %v1087
        %v1142 = vrcp.pop %v1090
        %v1143 = vrcp.pop %v1093
        %v1144 = vrcp.pop %v1096
        %v1145 = vrcp.pop %v1099
        %v1146 = vrcp.pop %v1102
        %v1147 = vrcp.pop %v1105
        %v1148 = vrcp.pop %v1108
        %v1149 = vrcp.pop %v1111
        %v1150 = vrcp.pop %v1114
        %v1151 = vrcp.pop %v1117
        %v1152 = vrcp.pop %v1120
        %v1153 = vmul.f32 %v898, %v1121
        %v1154 = vmul.f32 %v900, %v1121
        %v1155 = vmul.f32 %v902, %v1122
        %v1156 = vmul.f32 %v904, %v1122
        %v1157 = vmul.f32 %v906, %v1123
        %v1158 = vmul.f32 %v908, %v1123
        %v1159 = vmul.f32 %v910, %v1124
        %v1160 = vmul.f32 %v912, %v1124
        %v1161 = vmul.f32 %v914, %v1125
        %v1162 = vmul.f32 %v916, %v1125
        %v1163 = vmul.f32 %v918, %v1126
        %v1164 = vmul.f32 %v920, %v1126
        %v1165 = vmul.f32 %v922, %v1127
        %v1166 = vmul.f32 %v924, %v1127
        %v1167 = vmul.f32 %v926, %v1128
        %v1168 = vmul.f32 %v928, %v1128
        %v1169 = vmul.f32 %v930, %v1129
        %v1170 = vmul.f32 %v932, %v1129
        %v1171 = vmul.f32 %v934, %v1130
        %v1172 = vmul.f32 %v936, %v1130
        %v1173 = vmul.f32 %v938, %v1131
        %v1174 = vmul.f32 %v940, %v1131
        %v1175 = vmul.f32 %v942, %v1132
        %v1176 = vmul.f32 %v944, %v1132
        %v1177 = vmul.f32 %v946, %v1133
        %v1178 = vmul.f32 %v948, %v1133
        %v1179 = vmul.f32 %v950, %v1134
        %v1180 = vmul.f32 %v952, %v1134
        %v1181 = vmul.f32 %v954, %v1135
        %v1182 = vmul.f32 %v956, %v1135
        %v1183 = vmul.f32 %v958, %v1136
        %v1184 = vmul.f32 %v960, %v1136
        %v1185 = vmul.f32 %v962, %v1137
        %v1186 = vmul.f32 %v964, %v1137
        %v1187 = vmul.f32 %v966, %v1138
        %v1188 = vmul.f32 %v968, %v1138
        %v1189 = vmul.f32 %v970, %v1139
        %v1190 = vmul.f32 %v972, %v1139
        %v1191 = vmul.f32 %v974, %v1140
        %v1192 = vmul.f32 %v976, %v1140
        %v1193 = vmul.f32 %v978, %v1141
        %v1194 = vmul.f32 %v980, %v1141
        %v1195 = vmul.f32 %v982, %v1142
        %v1196 = vmul.f32 %v984, %v1142
        %v1197 = vmul.f32 %v986, %v1143
        %v1198 = vmul.f32 %v988, %v1143
        %v1199 = vmul.f32 %v990, %v1144
        %v1200 = vmul.f32 %v992, %v1144
        %v1201 = vmul.f32 %v994, %v1145
        %v1202 = vmul.f32 %v996, %v1145
        %v1203 = vmul.f32 %v998, %v1146
        %v1204 = vmul.f32 %v1000, %v1146
        %v1205 = vmul.f32 %v1002, %v1147
        %v1206 = vmul.f32 %v1004, %v1147
        %v1207 = vmul.f32 %v1006, %v1148
        %v1208 = vmul.f32 %v1008, %v1148
        %v1209 = vmul.f32 %v1010, %v1149
        %v1210 = vmul.f32 %v1012, %v1149
        %v1211 = vmul.f32 %v1014, %v1150
        %v1212 = vmul.f32 %v1016, %v1150
        %v1213 = vmul.f32 %v1018, %v1151
        %v1214 = vmul.f32 %v1020, %v1151
        %v1215 = vmul.f32 %v1022, %v1152
        %v1216 = vmul.f32 %v1024, %v1152
        %1217 = vst [vmem:[%s300] sm:$0xff] %v1153
        %1218 = vst [vmem:[%s300 + $0x8] sm:$0xff] %v1154
        %1219 = vst [vmem:[%s300 + $0x10] sm:$0xff] %v1155
        %1220 = vst [vmem:[%s300 + $0x18] sm:$0xff] %v1156
        %1221 = vst [vmem:[%s300 + $0x20] sm:$0xff] %v1157
        %1222 = vst [vmem:[%s300 + $0x28] sm:$0xff] %v1158
        %1223 = vst [vmem:[%s300 + $0x30] sm:$0xff] %v1159
        %1224 = vst [vmem:[%s300 + $0x38] sm:$0xff] %v1160
        %1225 = vst [vmem:[%s300 + $0x40] sm:$0xff] %v1161
        %1226 = vst [vmem:[%s300 + $0x48] sm:$0xff] %v1162
        %1227 = vst [vmem:[%s300 + $0x50] sm:$0xff] %v1163
        %1228 = vst [vmem:[%s300 + $0x58] sm:$0xff] %v1164
        %1229 = vst [vmem:[%s300 + $0x60] sm:$0xff] %v1165
        %1230 = vst [vmem:[%s300 + $0x68] sm:$0xff] %v1166
        %1231 = vst [vmem:[%s300 + $0x70] sm:$0xff] %v1167
        %1232 = vst [vmem:[%s300 + $0x78] sm:$0xff] %v1168
        %1233 = vst [vmem:[%s300 + $0x80] sm:$0xff] %v1169
        %1234 = vst [vmem:[%s300 + $0x88] sm:$0xff] %v1170
        %1235 = vst [vmem:[%s300 + $0x90] sm:$0xff] %v1171
        %1236 = vst [vmem:[%s300 + $0x98] sm:$0xff] %v1172
        %1237 = vst [vmem:[%s300 + $0xa0] sm:$0xff] %v1173
        %1238 = vst [vmem:[%s300 + $0xa8] sm:$0xff] %v1174
        %1239 = vst [vmem:[%s300 + $0xb0] sm:$0xff] %v1175
        %1240 = vst [vmem:[%s300 + $0xb8] sm:$0xff] %v1176
        %1241 = vst [vmem:[%s300 + $0xc0] sm:$0xff] %v1177
        %1242 = vst [vmem:[%s300 + $0xc8] sm:$0xff] %v1178
        %1243 = vst [vmem:[%s300 + $0xd0] sm:$0xff] %v1179
        %1244 = vst [vmem:[%s300 + $0xd8] sm:$0xff] %v1180
        %1245 = vst [vmem:[%s300 + $0xe0] sm:$0xff] %v1181
        %1246 = vst [vmem:[%s300 + $0xe8] sm:$0xff] %v1182
        %1247 = vst [vmem:[%s300 + $0xf0] sm:$0xff] %v1183
        %1248 = vst [vmem:[%s300 + $0xf8] sm:$0xff] %v1184
        %1249 = vst [vmem:[%s300 + $0x100] sm:$0xff] %v1185
        %1250 = vst [vmem:[%s300 + $0x108] sm:$0xff] %v1186
        %1251 = vst [vmem:[%s300 + $0x110] sm:$0xff] %v1187
        %1252 = vst [vmem:[%s300 + $0x118] sm:$0xff] %v1188
        %1253 = vst [vmem:[%s300 + $0x120] sm:$0xff] %v1189
        %1254 = vst [vmem:[%s300 + $0x128] sm:$0xff] %v1190
        %1255 = vst [vmem:[%s300 + $0x130] sm:$0xff] %v1191
        %1256 = vst [vmem:[%s300 + $0x138] sm:$0xff] %v1192
        %1257 = vst [vmem:[%s300 + $0x140] sm:$0xff] %v1193
        %1258 = vst [vmem:[%s300 + $0x148] sm:$0xff] %v1194
        %1259 = vst [vmem:[%s300 + $0x150] sm:$0xff] %v1195
        %1260 = vst [vmem:[%s300 + $0x158] sm:$0xff] %v1196
        %1261 = vst [vmem:[%s300 + $0x160] sm:$0xff] %v1197
        %1262 = vst [vmem:[%s300 + $0x168] sm:$0xff] %v1198
        %1263 = vst [vmem:[%s300 + $0x170] sm:$0xff] %v1199
        %1264 = vst [vmem:[%s300 + $0x178] sm:$0xff] %v1200
        %1265 = vst [vmem:[%s300 + $0x180] sm:$0xff] %v1201
        %1266 = vst [vmem:[%s300 + $0x188] sm:$0xff] %v1202
        %1267 = vst [vmem:[%s300 + $0x190] sm:$0xff] %v1203
        %1268 = vst [vmem:[%s300 + $0x198] sm:$0xff] %v1204
        %1269 = vst [vmem:[%s300 + $0x1a0] sm:$0xff] %v1205
        %1270 = vst [vmem:[%s300 + $0x1a8] sm:$0xff] %v1206
        %1271 = vst [vmem:[%s300 + $0x1b0] sm:$0xff] %v1207
        %1272 = vst [vmem:[%s300 + $0x1b8] sm:$0xff] %v1208
        %1273 = vst [vmem:[%s300 + $0x1c0] sm:$0xff] %v1209
        %1274 = vst [vmem:[%s300 + $0x1c8] sm:$0xff] %v1210
        %1275 = vst [vmem:[%s300 + $0x1d0] sm:$0xff] %v1211
        %1276 = vst [vmem:[%s300 + $0x1d8] sm:$0xff] %v1212
        %1277 = vst [vmem:[%s300 + $0x1e0] sm:$0xff] %v1213
        %1278 = vst [vmem:[%s300 + $0x1e8] sm:$0xff] %v1214
        %1279 = vst [vmem:[%s300 + $0x1f0] sm:$0xff] %v1215
        %1280 = vst [vmem:[%s300 + $0x1f8] sm:$0xff] %v1216
        %v1281 = vpack.c.bf16 %v1155, %v1153
        %v1282 = vpack.c.bf16 %v1156, %v1154
        %v1283 = vpack.c.bf16 %v1159, %v1157
        %v1284 = vpack.c.bf16 %v1160, %v1158
        %v1285 = vpack.c.bf16 %v1163, %v1161
        %v1286 = vpack.c.bf16 %v1164, %v1162
        %v1287 = vpack.c.bf16 %v1167, %v1165
        %v1288 = vpack.c.bf16 %v1168, %v1166
        %v1289 = vpack.c.bf16 %v1171, %v1169
        %v1290 = vpack.c.bf16 %v1172, %v1170
        %v1291 = vpack.c.bf16 %v1175, %v1173
        %v1292 = vpack.c.bf16 %v1176, %v1174
        %v1293 = vpack.c.bf16 %v1179, %v1177
        %v1294 = vpack.c.bf16 %v1180, %v1178
        %v1295 = vpack.c.bf16 %v1183, %v1181
        %v1296 = vpack.c.bf16 %v1184, %v1182
        %v1297 = vpack.c.bf16 %v1187, %v1185
        %v1298 = vpack.c.bf16 %v1188, %v1186
        %v1299 = vpack.c.bf16 %v1191, %v1189
        %v1300 = vpack.c.bf16 %v1192, %v1190
        %v1301 = vpack.c.bf16 %v1195, %v1193
        %v1302 = vpack.c.bf16 %v1196, %v1194
        %v1303 = vpack.c.bf16 %v1199, %v1197
        %v1304 = vpack.c.bf16 %v1200, %v1198
        %v1305 = vpack.c.bf16 %v1203, %v1201
        %v1306 = vpack.c.bf16 %v1204, %v1202
        %v1307 = vpack.c.bf16 %v1207, %v1205
        %v1308 = vpack.c.bf16 %v1208, %v1206
        %v1309 = vpack.c.bf16 %v1211, %v1209
        %v1310 = vpack.c.bf16 %v1212, %v1210
        %v1311 = vpack.c.bf16 %v1215, %v1213
        %v1312 = vpack.c.bf16 %v1216, %v1214
        %1313 = vmatprep.subr.bf16.mxu0 %v1296
        %1314 = vmatpush1.bf16.xpose.msra.mxu0 %v1295
        %1315 = vmatprep.subr.bf16.mxu0 %v1294
        %1316 = vmatpush1.bf16.xpose.msra.mxu0 %v1293
        %1317 = vmatprep.subr.bf16.mxu0 %v1292
        %1318 = vmatpush1.bf16.xpose.msra.mxu0 %v1291
        %1319 = vmatprep.subr.bf16.mxu0 %v1290
        %1320 = vmatpush1.bf16.xpose.msra.mxu0 %v1289
        %1321 = vmatprep.subr.bf16.mxu0 %v1288
        %1322 = vmatpush1.bf16.xpose.msra.mxu0 %v1287
        %1323 = vmatprep.subr.bf16.mxu0 %v1286
        %1324 = vmatpush1.bf16.xpose.msra.mxu0 %v1285
        %1325 = vmatprep.subr.bf16.mxu0 %v1284
        %1326 = vmatpush1.bf16.xpose.msra.mxu0 %v1283
        %1327 = vmatprep.subr.bf16.mxu0 %v1282
        %1328 = vmatpush1.bf16.xpose.msra.mxu0 %v1281
        %1329 = vmatprep.subr.bf16.mxu0 %v1312
        %1330 = vmatpush2.bf16.xpose.msra.mxu0 %v1311
        %1331 = vmatprep.subr.bf16.mxu0 %v1310
        %1332 = vmatpush2.bf16.xpose.msra.mxu0 %v1309
        %1333 = vmatprep.subr.bf16.mxu0 %v1308
        %1334 = vmatpush2.bf16.xpose.msra.mxu0 %v1307
        %1335 = vmatprep.subr.bf16.mxu0 %v1306
        %1336 = vmatpush2.bf16.xpose.msra.mxu0 %v1305
        %1337 = vmatprep.subr.bf16.mxu0 %v1304
        %1338 = vmatpush2.bf16.xpose.msra.mxu0 %v1303
        %1339 = vmatprep.subr.bf16.mxu0 %v1302
        %1340 = vmatpush2.bf16.xpose.msra.mxu0 %v1301
        %1341 = vmatprep.subr.bf16.mxu0 %v1300
        %1342 = vmatpush2.bf16.xpose.msra.mxu0 %v1299
        %1343 = vmatprep.subr.bf16.mxu0 %v1298
        %1344 = vmatpush2.bf16.xpose.msra.mxu0 %v1297
        %1345 = vmatprep.mubr.bf16.mxu0 %v327
        %1346 = vmatmul.mubr.bf16.gmra.mxu0 %v326
        %v1347 = vpop.f32.mrf.mxu0
        %v1348 = vadd.f32 0.0, %v1347
        %v1349 = vpop.f32.mrf.mxu0
        %v1350 = vadd.f32 0.0, %v1349
        %v1351 = vpop.f32.mrf.mxu0
        %v1352 = vadd.f32 0.0, %v1351
        %v1353 = vpop.f32.mrf.mxu0
        %v1354 = vadd.f32 0.0, %v1353
        %1355 = vmatprep.mubr.bf16.mxu0 %v329
        %1356 = vmatmul.mubr.bf16.gmra.mxu0 %v328
        %v1357 = vpop.f32.mrf.mxu0
        %v1358 = vadd.f32 0.0, %v1357
        %v1359 = vpop.f32.mrf.mxu0
        %v1360 = vadd.f32 0.0, %v1359
        %v1361 = vpop.f32.mrf.mxu0
        %v1362 = vadd.f32 0.0, %v1361
        %v1363 = vpop.f32.mrf.mxu0
        %v1364 = vadd.f32 0.0, %v1363
        %1365 = vdwg.mxu0
        %v1366 = vld [vmem:[%s3] sm:$0xff]
        %v1367 = vld [vmem:[%s3 + $0x8] sm:$0xff]
        %v1368 = vld [vmem:[%s3 + $0x10] sm:$0xff]
        %v1369 = vld [vmem:[%s3 + $0x18] sm:$0xff]
        %v1370 = vld [vmem:[%s4] sm:$0xff]
        %v1371 = vld [vmem:[%s4 + $0x8] sm:$0xff]
        %v1372 = vld [vmem:[%s4 + $0x10] sm:$0xff]
        %v1373 = vld [vmem:[%s4 + $0x18] sm:$0xff]
        %1375 = vset.pattern.permute.xlu0 0
        %1376 = vperm.xlu0 %1375, %v1370
        %v1377 = vpop.permute.xlu0 %1376
        %1380 = vset.pattern.permute.xlu0 0
        %1381 = vperm.xlu0 %1380, %v1371
        %v1382 = vpop.permute.xlu0 %1381
        %1385 = vset.pattern.permute.xlu0 0
        %1386 = vperm.xlu0 %1385, %v1372
        %v1387 = vpop.permute.xlu0 %1386
        %1390 = vset.pattern.permute.xlu0 0
        %1391 = vperm.xlu0 %1390, %v1373
        %v1392 = vpop.permute.xlu0 %1391
        %v1395 = vsel %vm358, %v1366, 0
        %v1398 = vsel %vm358, %v1367, 0
        %v1401 = vsel %vm358, %v1368, 0
        %v1404 = vsel %vm358, %v1369, 0
        %1406 = vmatprep.subr.mxu0 0.0
        %1407 = vmatpush1.msra.mxu0 0.0
        %1408 = vmatprep.subr.mxu0 0.0
        %1409 = vmatpush1.msra.mxu0 0.0
        %1410 = vmatprep.subr.mxu0 0.0
        %1411 = vmatpush1.msra.mxu0 0.0
        %1412 = vmatprep.subr.mxu0 0.0
        %1413 = vmatpush1.msra.mxu0 0.0
        %1414 = vmatprep.subr.mxu0 0.0
        %1415 = vmatpush1.msra.mxu0 0.0
        %1416 = vmatprep.subr.mxu0 0.0
        %1417 = vmatpush1.msra.mxu0 0.0
        %1418 = vmatprep.subr.mxu0 0.0
        %1419 = vmatpush1.msra.mxu0 0.0
        %1420 = vmatprep.subr.mxu0 0.0
        %1421 = vmatpush1.msra.mxu0 0.0
        %1422 = vmatprep.subr.mxu0 0.0
        %1423 = vmatpush1.msra.mxu0 0.0
        %1424 = vmatprep.subr.mxu0 0.0
        %1425 = vmatpush1.msra.mxu0 0.0
        %1426 = vmatprep.subr.mxu0 0.0
        %1427 = vmatpush1.msra.mxu0 0.0
        %1428 = vmatprep.subr.mxu0 0.0
        %1429 = vmatpush1.msra.mxu0 0.0
        %1430 = vmatprep.subr.mxu0 %v1364
        %1431 = vmatpush1.msra.mxu0 %v1362
        %1432 = vmatprep.subr.mxu0 %v1360
        %1433 = vmatpush1.msra.mxu0 %v1358
        %1434 = vmatprep.subr.mxu0 %v1354
        %1435 = vmatpush1.msra.mxu0 %v1352
        %1436 = vmatprep.subr.mxu0 %v1350
        %1437 = vmatpush1.msra.mxu0 %v1348
        %1438 = vmatprep.subr.mxu0 0.0
        %1439 = vmatpush2.msra.mxu0 0.0
        %1440 = vmatprep.subr.mxu0 0.0
        %1441 = vmatpush2.msra.mxu0 0.0
        %1442 = vmatprep.subr.mxu0 0.0
        %1443 = vmatpush2.msra.mxu0 0.0
        %1444 = vmatprep.subr.mxu0 0.0
        %1445 = vmatpush2.msra.mxu0 0.0
        %1446 = vmatprep.subr.mxu0 0.0
        %1447 = vmatpush2.msra.mxu0 0.0
        %1448 = vmatprep.subr.mxu0 0.0
        %1449 = vmatpush2.msra.mxu0 0.0
        %1450 = vmatprep.subr.mxu0 0.0
        %1451 = vmatpush2.msra.mxu0 0.0
        %1452 = vmatprep.subr.mxu0 0.0
        %1453 = vmatpush2.msra.mxu0 0.0
        %1454 = vmatprep.subr.mxu0 0.0
        %1455 = vmatpush2.msra.mxu0 0.0
        %1456 = vmatprep.subr.mxu0 0.0
        %1457 = vmatpush2.msra.mxu0 0.0
        %1458 = vmatprep.subr.mxu0 0.0
        %1459 = vmatpush2.msra.mxu0 0.0
        %1460 = vmatprep.subr.mxu0 0.0
        %1461 = vmatpush2.msra.mxu0 0.0
        %1462 = vmatprep.subr.mxu0 0.0
        %1463 = vmatpush2.msra.mxu0 0.0
        %1464 = vmatprep.subr.mxu0 0.0
        %1465 = vmatpush2.msra.mxu0 0.0
        %1466 = vmatprep.subr.mxu0 0.0
        %1467 = vmatpush2.msra.mxu0 0.0
        %1468 = vmatprep.subr.mxu0 0.0
        %1469 = vmatpush2.msra.mxu0 0.0
        %1470 = vmatprep.mubr.f32.mxu0 0.0
        %1471 = vmatmul.mubr.f32.gmra.mxu0 %v1395
        %v1472 = vpop.f32.mrf.mxu0
        %v1473 = vadd.f32 %v1377, %v1472
        %v1474 = vpop.f32.mrf.mxu0
        %v1475 = vadd.f32 %v1377, %v1474
        %1476 = vmatprep.mubr.f32.mxu0 0.0
        %1477 = vmatmul.mubr.f32.gmra.mxu0 %v1398
        %v1478 = vpop.f32.mrf.mxu0
        %v1479 = vadd.f32 %v1382, %v1478
        %v1480 = vpop.f32.mrf.mxu0
        %v1481 = vadd.f32 %v1382, %v1480
        %1482 = vmatprep.mubr.f32.mxu0 0.0
        %1483 = vmatmul.mubr.f32.gmra.mxu0 %v1401
        %v1484 = vpop.f32.mrf.mxu0
        %v1485 = vadd.f32 %v1387, %v1484
        %v1486 = vpop.f32.mrf.mxu0
        %v1487 = vadd.f32 %v1387, %v1486
        %1488 = vmatprep.mubr.f32.mxu0 0.0
        %1489 = vmatmul.mubr.f32.gmra.mxu0 %v1404
        %v1490 = vpop.f32.mrf.mxu0
        %v1491 = vadd.f32 %v1392, %v1490
        %v1492 = vpop.f32.mrf.mxu0
        %v1493 = vadd.f32 %v1392, %v1492
        %1494 = vdwg.mxu0
        %s1495 = sld [smem:[#allocation2]]
        %v1496 = vstv %s1495
        %v1497 = vmul.f32 %v1496, %v1473
        %v1498 = vmul.f32 %v1496, %v1475
        %v1499 = vmul.f32 %v1496, %v1479
        %v1500 = vmul.f32 %v1496, %v1481
        %v1501 = vmul.f32 %v1496, %v1485
        %v1502 = vmul.f32 %v1496, %v1487
        %v1503 = vmul.f32 %v1496, %v1491
        %v1504 = vmul.f32 %v1496, %v1493
        %v1505 = vadd.f32 %v1497, %v318
        %v1506 = vadd.f32 %v1498, %v319
        %v1507 = vadd.f32 %v1499, %v320
        %v1508 = vadd.f32 %v1500, %v321
        %v1509 = vadd.f32 %v1501, %v322
        %v1510 = vadd.f32 %v1502, %v323
        %v1511 = vadd.f32 %v1503, %v324
        %v1512 = vadd.f32 %v1504, %v325
        %1513 = vst [vmem:[%s314] sm:$0xff] %v1505
        %1514 = vst [vmem:[%s314 + $0x8] sm:$0xff] %v1506
        %1515 = vst [vmem:[%s314 + $0x10] sm:$0xff] %v1507
        %1516 = vst [vmem:[%s314 + $0x18] sm:$0xff] %v1508
        %1517 = vst [vmem:[%s314 + $0x20] sm:$0xff] %v1509
        %1518 = vst [vmem:[%s314 + $0x28] sm:$0xff] %v1510
        %1519 = vst [vmem:[%s314 + $0x30] sm:$0xff] %v1511
        %1520 = vst [vmem:[%s314 + $0x38] sm:$0xff] %v1512
        %s1521 = smul.u32 2, %s28
        %p1522 = scmp.lt.s32.totalorder %s27, 1
        %s1523 = scalar_select %p1522, %s27, 1
        %p1524 = scmp.lt.s32.totalorder %s1521, 1
        %s1525 = scalar_select %p1524, %s1521, 1
        %s1526 = smul.addr %s1523, 8
        %s1527 = sadd.s32 %s1525, %s1526
        %s1528 = smul.addr %s1527, 8
        %s1529 = scalar_lea.vmem %s6, %s1528
        %s1530 = sand.u32 %s204, 1
        %s1531 = scalar_lea.sflag [#allocation4], %s1530
        %s1532 = sand.u32 %s204, 1
        %s1533 = smul.addr %s1532, 512
        %s1534 = scalar_lea.vmem [#allocation3], %s1533
        // Predicated region
        $region45: #{self_attn.1} parent=43 // pred_check
          %p1535 = pneg %p186
        $region46: #{self_attn.1} parent=43 // pred_check_branch
          %1537 = sbr.rel (%p1535) target = $region48
        $region47: #{self_attn.1} parent=43 // pred_region
          %s1538 = smul.u32 2, %s28
        $region48: #{self_attn.1} parent=43 // pred_fallthru
          _
        // Predicated region
        $region49: #{self_attn.1} parent=43 // pred_check
          %p1539 = pneg %p214
        $region50: #{self_attn.1} parent=43 // pred_check_branch
          %1541 = sbr.rel (%p1539) target = $region52
        $region51: #{self_attn.1} parent=43 // pred_region
          %s1542 = smul.u32 32, %s28
          %s1544 = ssub.s32 8192, 8192
          %1545 = vsyncadd %s1531, %s1544
          %s1546 = smul.addr %s1542, 2
          %s1547 = smul.addr %s27, 64
          %s1548 = sadd.s32 %s1546, %s1547
          %s1549 = smul.addr %s1548, 128
          %s1550 = scalar_lea.hbm %s7, %s1549
          %s1551 = sshll.u32 %s1534, 4
          %s1552 = int_to_ptr.vmem [resolvable:$true] %s1551
          %1557 = dma.vmem_to_hbm [thread:$0]  %s1552, 8192, %s1550, %s1531, 256, 256, 16
        $region52: #{self_attn.1} parent=43 // pred_fallthru
          _
      $region44: #{self_attn.1} parent=5 // pred_fallthru
        _
      %p1558 = scmp.le.s32.totalorder 2, %s18
      // Predicated region
      $region53: #{self_attn.1} parent=5 // pred_check
        %p1559 = pneg %p1558
      $region54: #{self_attn.1} parent=5 // pred_check_branch
        %1561 = sbr.rel (%p1559) target = $region56
      $region55: #{self_attn.1} parent=5 // pred_region
        %s1562 = ssub.s32 %s18, 2
        // Predicated region
        $region57: #{self_attn.1} parent=55 // pred_check
          %p1563 = pneg %p192
        $region58: #{self_attn.1} parent=55 // pred_check_branch
          %1565 = sbr.rel (%p1563) target = $region60
        $region59: #{self_attn.1} parent=55 // pred_region
          %s1566 = smul.u32 2, %s30
          %p1567 = scmp.lt.s32.totalorder %s29, 1
          %s1568 = scalar_select %p1567, %s29, 1
          %p1569 = scmp.lt.s32.totalorder %s1566, 1
          %s1570 = scalar_select %p1569, %s1566, 1
          %s1571 = smul.addr %s1568, 8
          %s1572 = sadd.s32 %s1570, %s1571
          %s1573 = smul.addr %s1572, 8
          %s1574 = scalar_lea.vmem %s6, %s1573
        $region60: #{self_attn.1} parent=55 // pred_fallthru
          _
        // Predicated region
        $region61: #{self_attn.1} parent=55 // pred_check
          %p1575 = pneg %p220
        $region62: #{self_attn.1} parent=55 // pred_check_branch
          %1577 = sbr.rel (%p1575) target = $region64
        $region63: #{self_attn.1} parent=55 // pred_region
          %s1578 = sand.u32 %s205, 1
          %s1579 = scalar_lea.sflag [#allocation4], %s1578
          %s1580 = sand.u32 %s205, 1
          %s1581 = smul.addr %s1580, 512
          %s1582 = scalar_lea.vmem [#allocation3], %s1581
          %1583 = dma.done %s1579, 8192
        $region64: #{self_attn.1} parent=55 // pred_fallthru
          _
      $region56: #{self_attn.1} parent=5 // pred_fallthru
        _
    $region6: #{self_attn.1} parent=1 // loop_footer
      %s22 = sadd.s32 1, %s18
    $region7: #{self_attn.1} parent=1 // loop_footer_branch
      %17 = sbr.rel target = $region3
    $region8: #{self_attn.1} parent=1 // loop_exit
      _
    %1584 = vsyncpa [#allocation4], 1
    %s1585 = scalar_lea.sflag [#allocation4], 1
    %1586 = vsyncpa %s1585, 1

</llo_original>
